<compile_context>
chip_gen: v6e
topology: v6e:2x2x1
jax: 0.10.0
libtpu: 0.0.40
codegen_flags: <defaults>
</compile_context>

<pallas_src>
import functools
import itertools

import jax
import jax.numpy as jnp
from jax.experimental import pallas as pl
from jax.experimental.pallas import tpu as pltpu


# ---------------------------------------------------------------------------
# Helpers
# ---------------------------------------------------------------------------
def _round_up(x, m):
    return ((x + m - 1) // m) * m


def _pick_block(dim, cap, align):
    """Largest block <= cap, multiple of `align`, dividing round_up(dim, align).

    Falls back to `cap` (accepting padding) when only tiny divisors exist.
    """
    d = _round_up(dim, align)
    if d <= cap:
        return d
    best = None
    t = cap
    while t >= align:
        if d % t == 0:
            best = t
            break
        t -= align
    if best is None or best < cap // 4:
        best = cap
    return best


def _apply_act(y, act):
    if act == "relu":
        return jnp.maximum(y, 0.0)
    if act == "sigmoid":
        return jax.nn.sigmoid(y)
    return y


# ---------------------------------------------------------------------------
# Fused matmul kernels: y = act(A @ B [+ bias]); optional per-channel sum/sumsq
# (for training-mode BatchNorm) emitted as tiny side outputs.
# ---------------------------------------------------------------------------
def _mm_kernel_multi(a_ref, b_ref, *rest, has_bias, act, compute_stats):
    rest = list(rest)
    bias_ref = rest.pop(0) if has_bias else None
    y_ref = rest.pop(0)
    if compute_stats:
        s1_ref = rest.pop(0)
        s2_ref = rest.pop(0)
    acc_ref = rest.pop(0)

    k = pl.program_id(2)

    @pl.when(k == 0)
    def _():
        acc_ref[...] = jnp.zeros_like(acc_ref)

    acc_ref[...] += jnp.dot(a_ref[...], b_ref[...],
                            preferred_element_type=jnp.float32)

    # Output (and stats) only materialized on the last k step: the output block is
    # resident across the k axis, so earlier stores would be redundant vst traffic.
    @pl.when(k == pl.num_programs(2) - 1)
    def _():
        acc = acc_ref[...]
        if compute_stats:
            # Padded rows of A are exactly zero -> they contribute 0 to both sums.
            s1_ref[...] = jnp.sum(acc, axis=0, keepdims=True)[None]
            s2_ref[...] = jnp.sum(acc * acc, axis=0, keepdims=True)[None]
        y = acc
        if has_bias:
            y = y + bias_ref[...]
        y = _apply_act(y, act)
        y_ref[...] = y.astype(y_ref.dtype)


def _mm_kernel_single(a_ref, b_ref, *rest, has_bias, act, compute_stats):
    # Single k-step fast path: no accumulator scratch, no zero-init / readback.
    rest = list(rest)
    bias_ref = rest.pop(0) if has_bias else None
    y_ref = rest.pop(0)
    if compute_stats:
        s1_ref = rest.pop(0)
        s2_ref = rest.pop(0)
    acc = jnp.dot(a_ref[...], b_ref[...], preferred_element_type=jnp.float32)
    if compute_stats:
        s1_ref[...] = jnp.sum(acc, axis=0, keepdims=True)[None]
        s2_ref[...] = jnp.sum(acc * acc, axis=0, keepdims=True)[None]
    y = acc
    if has_bias:
        y = y + bias_ref[...]
    y = _apply_act(y, act)
    y_ref[...] = y.astype(y_ref.dtype)


# Largest K handled in one k step (block VMEM-bounded: ~8 MiB double-buffered worst
# case at tm=512, tn=256, fits the 16 MiB v5e scoped-VMEM default with headroom).
_SINGLE_K_MAX = 2304


def fused_matmul(a, b, bias=None, act="none", compute_stats=False,
                 out_dtype=jnp.float32):
    """(M,K)@(K,N) with fused bias/act epilogue; bf16 MXU operands, f32 accumulate."""
    M, K = a.shape
    K2, N = b.shape
    assert K == K2

    a16 = a if a.dtype == jnp.bfloat16 else a.astype(jnp.bfloat16)
    b16 = b if b.dtype == jnp.bfloat16 else b.astype(jnp.bfloat16)

    tm = _pick_block(M, 512, 16)                 # 16-row alignment for bf16 packing
    Mp = _round_up(M, tm)
    Np = _round_up(N, 128)
    tn = 256 if Np % 256 == 0 else 128
    if Mp == tm and Np == 256:
        tn = 128      # guarantee >=2 parallel blocks for the 2 TensorCores on v7x

    single_k = K <= _SINGLE_K_MAX
    if single_k:
        Kp = _round_up(K, 128)
        tk = Kp                                   # one full-width k block
    else:
        tk = _pick_block(K, 512, 128)
        Kp = _round_up(K, tk)

    # Pads are on bf16 and fuse with the im2col concatenate under the conv jit.
    if Mp != M or Kp != K:
        a16 = jnp.pad(a16, ((0, Mp - M), (0, Kp - K)))
    if Kp != K or Np != N:
        b16 = jnp.pad(b16, ((0, Kp - K), (0, Np - N)))

    has_bias = bias is not None
    args = [a16, b16]
    if single_k:
        in_specs = [pl.BlockSpec((tm, tk), lambda i, j: (i, 0)),
                    pl.BlockSpec((tk, tn), lambda i, j: (0, j))]
    else:
        in_specs = [pl.BlockSpec((tm, tk), lambda i, j, k: (i, k)),
                    pl.BlockSpec((tk, tn), lambda i, j, k: (k, j))]
    if has_bias:
        b2 = bias.astype(jnp.float32)
        if Np != N:
            b2 = jnp.pad(b2, ((0, Np - N),))
        args.append(b2.reshape(1, Np))
        in_specs.append(pl.BlockSpec(
            (1, tn), (lambda i, j: (0, j)) if single_k else (lambda i, j, k: (0, j))))

    nmt = Mp // tm
    y_shape = jax.ShapeDtypeStruct((Mp, Np), out_dtype)
    y_spec = pl.BlockSpec(
        (tm, tn), (lambda i, j: (i, j)) if single_k else (lambda i, j, k: (i, j)))
    if compute_stats:
        st_shape = jax.ShapeDtypeStruct((nmt, 1, Np), jnp.float32)
        st_spec = pl.BlockSpec(
            (1, 1, tn),
            (lambda i, j: (i, 0, j)) if single_k else (lambda i, j, k: (i, 0, j)))
        out_shape = (y_shape, st_shape, st_shape)
        out_specs = [y_spec, st_spec, st_spec]
    else:
        out_shape = y_shape
        out_specs = y_spec

    if single_k:
        kernel = functools.partial(_mm_kernel_single, has_bias=has_bias, act=act,
                                   compute_stats=compute_stats)
        grid = (Mp // tm, Np // tn)
        scratch = []
        dims = ("parallel", "parallel")
    else:
        kernel = functools.partial(_mm_kernel_multi, has_bias=has_bias, act=act,
                                   compute_stats=compute_stats)
        grid = (Mp // tm, Np // tn, Kp // tk)
        scratch = [pltpu.VMEM((tm, tn), jnp.float32)]
        dims = ("parallel", "parallel", "arbitrary")

    res = pl.pallas_call(
        kernel,
        out_shape=out_shape,
        grid_spec=pltpu.PrefetchScalarGridSpec(
            num_scalar_prefetch=0,
            grid=grid,
            in_specs=in_specs,
            out_specs=out_specs,
            scratch_shapes=scratch),
        compiler_params=pltpu.CompilerParams(dimension_semantics=dims),
    )(*args)

    if compute_stats:
        y, s1, s2 = res
        return (y[:M, :N],
                s1[:, 0, :N].sum(axis=0),
                s2[:, 0, :N].sum(axis=0))
    return res[:M, :N]


# ---------------------------------------------------------------------------
# Fused affine kernel (BatchNorm apply): y = act(x * scale + shift [+ residual])
# bf16 in / bf16 out, f32 math in-register.
# ---------------------------------------------------------------------------
def _affine_kernel(x_ref, s_ref, b_ref, o_ref, *, act):
    y = x_ref[...].astype(jnp.float32) * s_ref[...] + b_ref[...]
    o_ref[...] = _apply_act(y, act).astype(o_ref.dtype)


def _affine_res_kernel(x_ref, s_ref, b_ref, r_ref, o_ref, *, act):
    y = (x_ref[...].astype(jnp.float32) * s_ref[...] + b_ref[...]
         + r_ref[...].astype(jnp.float32))
    o_ref[...] = _apply_act(y, act).astype(o_ref.dtype)


@functools.partial(jax.jit, static_argnames=("act",))
def _affine_call(x2, scale, shift, residual, act):
    M, C = x2.shape
    # ~1 MiB bf16 tile per operand; double-buffered operands+out stay well under the
    # 16 MiB v5e scoped-VMEM default (and v7x's 32 MiB).
    cap = min(4096, max(8, _round_up((1 << 20) // (2 * C), 8)))
    tm = _pick_block(M, cap, 8)
    Mp = _round_up(M, tm)
    x_p = x2 if Mp == M else jnp.pad(x2, ((0, Mp - M), (0, 0)))
    s2 = scale.reshape(1, C).astype(jnp.float32)
    b2 = shift.reshape(1, C).astype(jnp.float32)
    args = [x_p, s2, b2]
    in_specs = [pl.BlockSpec((tm, C), lambda i: (i, 0)),
                pl.BlockSpec((1, C), lambda i: (0, 0)),
                pl.BlockSpec((1, C), lambda i: (0, 0))]
    if residual is not None:
        r_p = residual if Mp == M else jnp.pad(residual, ((0, Mp - M), (0, 0)))
        args.append(r_p)
        in_specs.append(pl.BlockSpec((tm, C), lambda i: (i, 0)))
        kernel = functools.partial(_affine_res_kernel, act=act)
    else:
        kernel = functools.partial(_affine_kernel, act=act)
    out = pl.pallas_call(
        kernel,
        out_shape=jax.ShapeDtypeStruct((Mp, C), jnp.bfloat16),
        grid_spec=pltpu.PrefetchScalarGridSpec(
            num_scalar_prefetch=0, grid=(Mp // tm,),
            in_specs=in_specs,
            out_specs=pl.BlockSpec((tm, C), lambda i: (i, 0))),
        compiler_params=pltpu.CompilerParams(
            dimension_semantics=("parallel",)),          # row blocks are independent
    )(*args)
    return out[:M]


def affine_act(x, scale, shift, act="none", residual=None):
    shp = x.shape
    C = shp[-1]
    M = 1
    for d in shp[:-1]:
        M *= d
    x2 = x.reshape(M, C)
    if x2.dtype != jnp.bfloat16:
        x2 = x2.astype(jnp.bfloat16)
    r2 = None
    if residual is not None:
        r2 = residual.reshape(M, C)
        if r2.dtype != jnp.bfloat16:
            r2 = r2.astype(jnp.bfloat16)
    sc, sh = scale, shift
    # Lane-dense repack when C < 128: avoids mostly-masked vector stores.
    if C < 128 and 128 % C == 0 and M % (128 // C) == 0:
        rep = 128 // C
        x2 = x2.reshape(M // rep, 128)
        r2 = None if r2 is None else r2.reshape(M // rep, 128)
        sc = jnp.tile(sc, rep)
        sh = jnp.tile(sh, rep)
    out = _affine_call(x2, sc, sh, r2, act=act)
    return out.reshape(shp)


# ---------------------------------------------------------------------------
# Conv / pool / norm building blocks
# ---------------------------------------------------------------------------
@functools.partial(jax.jit, static_argnames=("stride", "padding", "dilation", "act",
                                             "compute_stats", "out_dtype"))
def conv2d(x, w, bias=None, *, stride=1, padding=0, dilation=1, act="none",
           compute_stats=False, out_dtype=jnp.float32):
    """NHWC conv, weight (KH, KW, Cin, Cout); bias/act fused into the matmul."""
    N, H, W, C = x.shape
    KH, KW, _, OC = w.shape
    OH = (H + 2 * padding - dilation * (KH - 1) - 1) // stride + 1
    OW = (W + 2 * padding - dilation * (KW - 1) - 1) // stride + 1
    # Cast BEFORE pad/im2col so the patch tensor is written/read as bf16 (fuses with
    # pad/concatenate under this jit); no separate f32->bf16 pass later.
    x = x if x.dtype == jnp.bfloat16 else x.astype(jnp.bfloat16)
    if padding:
        x = jnp.pad(x, ((0, 0), (padding, padding), (padding, padding), (0, 0)))
    if KH == 1 and KW == 1 and stride == 1 and padding == 0:
        patches = x.reshape(N * OH * OW, C)            # 1x1 conv: no im2col copy
    else:
        cols = []
        for kh in range(KH):
            for kw in range(KW):
                cols.append(
                    x[:, kh * dilation: kh * dilation + (OH - 1) * stride + 1: stride,
                        kw * dilation: kw * dilation + (OW - 1) * stride + 1: stride, :])
        patches = jnp.concatenate(cols, axis=-1).reshape(N * OH * OW, KH * KW * C)
    res = fused_matmul(patches, w.reshape(KH * KW * C, OC), bias=bias, act=act,
                       compute_stats=compute_stats, out_dtype=out_dtype)
    if compute_stats:
        y, s1, s2 = res
        return y.reshape(N, OH, OW, OC), s1, s2
    return res.reshape(N, OH, OW, OC)


@functools.partial(jax.jit, static_argnames=("stride", "padding", "output_padding",
                                             "act", "compute_stats", "out_dtype"))
def conv_transpose2d(x, w, bias=None, *, stride, padding, output_padding,
                     act="none", compute_stats=False, out_dtype=jnp.float32):
    """Sub-pixel (phase-decomposed) ConvTranspose2d.

    Each of the stride^2 output phases is an ordinary small stride-1 conv on the
    un-dilated input; phases are interleaved at the end.  Avoids the 4x mostly-zero
    dilated intermediate and ~75% structurally wasted MXU MACs.
    """
    N, H, W, C = x.shape
    KH, KW, _, OC = w.shape
    s = stride
    OH = (H - 1) * s - 2 * padding + KH + output_padding
    OW = (W - 1) * s - 2 * padding + KW + output_padding
    assert OH % s == 0 and OW % s == 0, "phase decomposition expects OH/OW % stride == 0"
    ph_h, ph_w = OH // s, OW // s

    def taps(r, K):
        t = []
        for k in range(K):
            if (r + padding - k) % s == 0:
                t.append(((r + padding - k) // s, k))
        return t

    n_in = x.shape[0]
    phases = []
    s1_tot = None
    s2_tot = None
    for ry in range(s):
        ty = taps(ry, KH)
        for rx in range(s):
            tx = taps(rx, KW)
            dys = [d for d, _ in ty]
            dxs = [d for d, _ in tx]
            dmin_y, dmax_y = min(dys), max(dys)
            dmin_x, dmax_x = min(dxs), max(dxs)
            kh = dmax_y - dmin_y + 1
            kw = dmax_x - dmin_x + 1
            sub = jnp.zeros((kh, kw, C, OC), w.dtype)
            for (dy, ky) in ty:
                for (dx, kx) in tx:
                    sub = sub.at[dy - dmin_y, dx - dmin_x].set(w[ky, kx])
            pt = max(0, -dmin_y)
            pb = max(0, (ph_h - 1) + dmax_y - (H - 1))
            pL = max(0, -dmin_x)
            pr = max(0, (ph_w - 1) + dmax_x - (W - 1))
            xp = x
            if pt or pb or pL or pr:
                xp = jnp.pad(x, ((0, 0), (pt, pb), (pL, pr), (0, 0)))
            off_y = dmin_y + pt
            off_x = dmin_x + pL
            xp = xp[:, off_y: off_y + ph_h + kh - 1,
                    off_x: off_x + ph_w + kw - 1, :]
            res = conv2d(xp, sub, bias, stride=1, padding=0, act=act,
                         compute_stats=compute_stats, out_dtype=out_dtype)
            if compute_stats:
                yph, s1, s2 = res
                s1_tot = s1 if s1_tot is None else s1_tot + s1
                s2_tot = s2 if s2_tot is None else s2_tot + s2
            else:
                yph = res
            phases.append(yph)

    stacked = jnp.stack(phases, axis=0).reshape(s, s, n_in, ph_h, ph_w, OC)
    y = jnp.transpose(stacked, (2, 3, 0, 4, 1, 5)).reshape(n_in, OH, OW, OC)
    if compute_stats:
        return y, s1_tot, s2_tot
    return y


def bn_apply(y, s1, s2, gamma, beta, act="none", residual=None):
    """Training-mode BatchNorm2d from fused per-channel sum / sum-of-squares."""
    cnt = float(y.shape[0] * y.shape[1] * y.shape[2])
    mean = s1 / cnt
    var = jnp.maximum(s2 / cnt - mean * mean, 0.0)
    scale = gamma * jax.lax.rsqrt(var + 1e-5)
    shift = beta - mean * scale
    return affine_act(y, scale, shift, act=act, residual=residual)


def conv_bn(x, cp, bnp, *, stride=1, padding=0, dilation=1, act="none", residual=None):
    # A conv bias immediately followed by train-mode BN cancels exactly; omitted.
    y, s1, s2 = conv2d(x, cp["w"], None, stride=stride, padding=padding,
                       dilation=dilation, compute_stats=True,
                       out_dtype=jnp.bfloat16)
    return bn_apply(y, s1, s2, bnp["g"], bnp["b"], act=act, residual=residual)


@functools.partial(jax.jit, static_argnames=("k", "stride", "padding"))
def maxpool2d(x, k, stride, padding=0):
    N, H, W, C = x.shape
    if padding:
        x = jnp.pad(x, ((0, 0), (padding, padding), (padding, padding), (0, 0)),
                    constant_values=-jnp.inf)
    OH = (H + 2 * padding - k) // stride + 1
    OW = (W + 2 * padding - k) // stride + 1
    out = None
    for kh in range(k):
        for kw in range(k):
            sl = x[:, kh: kh + (OH - 1) * stride + 1: stride,
                    kw: kw + (OW - 1) * stride + 1: stride, :]
            out = sl if out is None else jnp.maximum(out, sl)
    return out


@functools.partial(jax.jit, static_argnames=("oh", "ow"))
def resize_bilinear_align_corners(x, oh, ow):
    N, H, W, C = x.shape

    def grid(o, i):
        if i == 1:
            return (jnp.zeros((o,), jnp.int32), jnp.zeros((o,), jnp.int32),
                    jnp.zeros((o,), jnp.float32))
        src = jnp.arange(o, dtype=jnp.float32) * (float(i - 1) / float(o - 1))
        i0 = jnp.clip(jnp.floor(src).astype(jnp.int32), 0, i - 1)
        i1 = jnp.clip(i0 + 1, 0, i - 1)
        return i0, i1, src - i0.astype(jnp.float32)

    y0, y1, fy = grid(oh, H)
    x0, x1, fx = grid(ow, W)
    top = jnp.take(x, y0, axis=1)
    bot = jnp.take(x, y1, axis=1)
    rows = top * (1.0 - fy)[None, :, None, None] + bot * fy[None, :, None, None]
    left = jnp.take(rows, x0, axis=2)
    right = jnp.take(rows, x1, axis=2)
    return left * (1.0 - fx)[None, None, :, None] + right * fx[None, None, :, None]


# ---------------------------------------------------------------------------
# ResNet blocks / CE-Net modules
# ---------------------------------------------------------------------------
def basic_block_fwd(p, x):
    s = p["stride"]
    out = conv_bn(x, p["conv1"], p["bn1"], stride=s, padding=1, act="relu")
    if "down" in p:
        idn = conv_bn(x, p["down"]["conv"], p["down"]["bn"], stride=s)
    else:
        idn = x
    return conv_bn(out, p["conv2"], p["bn2"], padding=1, act="relu", residual=idn)


def bottleneck_fwd(p, x):
    s = p["stride"]
    out = conv_bn(x, p["conv1"], p["bn1"], act="relu")
    out = conv_bn(out, p["conv2"], p["bn2"], stride=s, padding=1, act="relu")
    if "down" in p:
        idn = conv_bn(x, p["down"]["conv"], p["down"]["bn"], stride=s)
    else:
        idn = x
    return conv_bn(out, p["conv3"], p["bn3"], act="relu", residual=idn)


def run_layer(ps, x, fwd):
    for p in ps:
        x = fwd(p, x)
    return x


def dac_fwd(p, x):
    n = x.shape[0]
    xf = x.astype(jnp.bfloat16)
    t1 = conv2d(xf, p["dilate1"]["w"], p["dilate1"]["b"], padding=1,
                out_dtype=jnp.bfloat16)
    # dilate2 shares weights for x and t1 -> one matmul with 2x the rows (better MXU
    # fill + one weight stream).  Same trick for conv1x1 over t2/t21/t321.
    both = conv2d(jnp.concatenate([xf, t1], axis=0), p["dilate2"]["w"],
                  p["dilate2"]["b"], padding=3, dilation=3, out_dtype=jnp.bfloat16)
    t2, t21 = both[:n], both[n:]
    t321 = conv2d(t21, p["dilate3"]["w"], p["dilate3"]["b"], padding=5, dilation=5,
                  out_dtype=jnp.bfloat16)
    d = conv2d(jnp.concatenate([t2, t21, t321], axis=0), p["conv1x1"]["w"],
               p["conv1x1"]["b"], act="relu", out_dtype=jnp.float32)
    d2, d3, d4 = d[:n], d[n:2 * n], d[2 * n:]
    d1 = jnp.maximum(t1.astype(jnp.float32), 0.0)
    return x.astype(jnp.float32) + d1 + d2 + d3 + d4


def spp_fwd(p, x):
    N, H, W, C = x.shape
    w = p["conv"]["w"][0, 0]                       # (C, 1)
    b = p["conv"]["b"]
    outs = []
    for (k, s) in [(2, 2), (3, 3), (5, 5), (6, 6)]:
        pooled = maxpool2d(x, k=k, stride=s, padding=0)
        # OC == 1 on a <=6x6 map: >96% of MXU lanes would be idle in Pallas; XLA wins.
        c = jnp.einsum("nhwc,co->nhwo", pooled, w) + b
        outs.append(resize_bilinear_align_corners(c, oh=H, ow=W))
    return jnp.concatenate(outs + [x], axis=-1)


def decoder_fwd(p, x):
    x = conv_bn(x, p["conv1"], p["bn1"], act="relu")
    y, s1, s2 = conv_transpose2d(x, p["deconv"]["w"], None, stride=2, padding=1,
                                 output_padding=1, compute_stats=True,
                                 out_dtype=jnp.bfloat16)
    x = bn_apply(y, s1, s2, p["bn2"]["g"], p["bn2"]["b"], act="relu")
    x = conv_bn(x, p["conv3"], p["bn3"], act="relu")
    return x


# ---------------------------------------------------------------------------
# Parameters (deterministic synthetic init)
# ---------------------------------------------------------------------------
_BASE_KEY = jax.random.PRNGKey(0)
_COUNTER = itertools.count(1)


def _next_key():
    return jax.random.fold_in(_BASE_KEY, next(_COUNTER))


def conv_p(cin, cout, k, bias=False):
    std = (2.0 / (k * k * cout)) ** 0.5
    p = {"w": jax.random.normal(_next_key(), (k, k, cin, cout), jnp.float32) * std}
    if bias:
        p["b"] = jnp.zeros((cout,), jnp.float32)
    return p


def bn_p(c):
    return {"g": jnp.ones((c,), jnp.float32), "b": jnp.zeros((c,), jnp.float32)}


def basic_block_p(cin, planes, stride):
    p = {"conv1": conv_p(cin, planes, 3), "bn1": bn_p(planes),
         "conv2": conv_p(planes, planes, 3), "bn2": bn_p(planes), "stride": stride}
    if stride != 1 or cin != planes:
        p["down"] = {"conv": conv_p(cin, planes, 1), "bn": bn_p(planes)}
    return p


def make_basic_layer(cin, planes, blocks, stride):
    ps = [basic_block_p(cin, planes, stride)]
    for _ in range(1, blocks):
        ps.append(basic_block_p(planes, planes, 1))
    return ps


def bottleneck_p(cin, planes, stride):
    out_c = planes * 4
    p = {"conv1": conv_p(cin, planes, 1), "bn1": bn_p(planes),
         "conv2": conv_p(planes, planes, 3), "bn2": bn_p(planes),
         "conv3": conv_p(planes, out_c, 1), "bn3": bn_p(out_c), "stride": stride}
    if stride != 1 or cin != out_c:
        p["down"] = {"conv": conv_p(cin, out_c, 1), "bn": bn_p(out_c)}
    return p


def make_bottleneck_layer(cin, planes, blocks, stride):
    ps = [bottleneck_p(cin, planes, stride)]
    for _ in range(1, blocks):
        ps.append(bottleneck_p(planes * 4, planes, 1))
    return ps


def decoder_p(cin, cout):
    mid = cin // 4
    return {"conv1": conv_p(cin, mid, 1, bias=True), "bn1": bn_p(mid),
            "deconv": conv_p(mid, mid, 3, bias=True), "bn2": bn_p(mid),
            "conv3": conv_p(mid, cout, 1, bias=True), "bn3": bn_p(cout)}


def init_params():
    P = {}
    # CE-Net encoder (resnet34 topology; synthetic weights stand in for pretrained)
    P["firstconv"] = conv_p(3, 64, 7)
    P["firstbn"] = bn_p(64)
    P["encoder1"] = make_basic_layer(64, 64, 3, 1)
    P["encoder2"] = make_basic_layer(64, 128, 4, 2)
    P["encoder3"] = make_basic_layer(128, 256, 6, 2)
    P["encoder4"] = make_basic_layer(256, 512, 3, 2)
    P["dblock"] = {"dilate1": conv_p(512, 512, 3, bias=True),
                   "dilate2": conv_p(512, 512, 3, bias=True),
                   "dilate3": conv_p(512, 512, 3, bias=True),
                   "conv1x1": conv_p(512, 512, 1, bias=True)}
    P["spp"] = {"conv": conv_p(512, 1, 1, bias=True)}
    P["decoder4"] = decoder_p(516, 256)
    P["decoder3"] = decoder_p(256, 128)
    P["decoder2"] = decoder_p(128, 64)
    P["decoder1"] = decoder_p(64, 64)
    P["finaldeconv1"] = conv_p(64, 32, 4, bias=True)
    P["finalconv2"] = conv_p(32, 32, 3, bias=True)
    P["finalconv3"] = conv_p(32, 3, 3, bias=True)
    P["finalconv4"] = conv_p(3, 3, 3, bias=True)
    # classification branch (ResNet50-style Bottleneck stack)
    P["conv1"] = conv_p(3, 64, 7)
    P["bn1"] = bn_p(64)
    P["equal1"] = conv_p(128, 64, 3, bias=True)
    P["equal2"] = conv_p(320, 256, 3, bias=True)
    P["equal3"] = conv_p(640, 512, 3, bias=True)
    P["equal4"] = conv_p(1280, 1024, 3, bias=True)
    P["layer1"] = make_bottleneck_layer(64, 64, 3, 1)
    P["layer2"] = make_bottleneck_layer(256, 128, 4, 2)
    P["layer3"] = make_bottleneck_layer(512, 256, 6, 2)
    P["layer4"] = make_bottleneck_layer(1024, 512, 3, 2)
    P["fc1"] = {"w": jax.random.normal(_next_key(), (2048, 5), jnp.float32) * 0.02,
                "b": jnp.zeros((5,), jnp.float32)}
    return P


# ---------------------------------------------------------------------------
# Full forward pass
# ---------------------------------------------------------------------------
def forward(P, input_nchw):
    x_in = jnp.transpose(input_nchw, (0, 2, 3, 1)).astype(jnp.float32)  # -> NHWC

    # --- CE-Net (resnet34 encoder + DAC + SPP + decoders) ---
    x = conv_bn(x_in, P["firstconv"], P["firstbn"], stride=2, padding=3, act="relu")
    x = maxpool2d(x, k=3, stride=2, padding=1)
    e1 = run_layer(P["encoder1"], x, basic_block_fwd)
    e2 = run_layer(P["encoder2"], e1, basic_block_fwd)
    e3 = run_layer(P["encoder3"], e2, basic_block_fwd)
    e4 = run_layer(P["encoder4"], e3, basic_block_fwd)
    e4 = dac_fwd(P["dblock"], e4)
    e4 = spp_fwd(P["spp"], e4)
    d4 = decoder_fwd(P["decoder4"], e4) + e3
    d3 = decoder_fwd(P["decoder3"], d4) + e2
    d2 = decoder_fwd(P["decoder2"], d3) + e1
    d1 = decoder_fwd(P["decoder1"], d2)
    out = conv_transpose2d(d1, P["finaldeconv1"]["w"], P["finaldeconv1"]["b"],
                           stride=2, padding=1, output_padding=0, act="relu",
                           out_dtype=jnp.bfloat16)
    out = conv2d(out, P["finalconv2"]["w"], P["finalconv2"]["b"], padding=1,
                 act="relu", out_dtype=jnp.bfloat16)
    out = conv2d(out, P["finalconv3"]["w"], P["finalconv3"]["b"], padding=1) + x_in
    out = conv2d(out, P["finalconv4"]["w"], P["finalconv4"]["b"], padding=1,
                 act="sigmoid")

    # --- IQA classification branch (Bottleneck ResNet with decoder skip concats) ---
    x1 = conv_bn(x_in, P["conv1"], P["bn1"], stride=2, padding=3, act="relu")
    x1 = conv2d(jnp.concatenate([x1, d1], axis=-1), P["equal1"]["w"],
                P["equal1"]["b"], padding=1, out_dtype=jnp.bfloat16)
    x1 = maxpool2d(x1, k=3, stride=2, padding=1)
    x1 = run_layer(P["layer1"], x1, bottleneck_fwd)
    x1 = conv2d(jnp.concatenate([x1, d2], axis=-1), P["equal2"]["w"],
                P["equal2"]["b"], padding=1, out_dtype=jnp.bfloat16)
    x1 = run_layer(P["layer2"], x1, bottleneck_fwd)
    x1 = conv2d(jnp.concatenate([x1, d3], axis=-1), P["equal3"]["w"],
                P["equal3"]["b"], padding=1, out_dtype=jnp.bfloat16)
    x1 = run_layer(P["layer3"], x1, bottleneck_fwd)
    x1 = conv2d(jnp.concatenate([x1, d4], axis=-1), P["equal4"]["w"],
                P["equal4"]["b"], padding=1, out_dtype=jnp.bfloat16)
    x1 = run_layer(P["layer4"], x1, bottleneck_fwd)
    feat = jnp.mean(x1.astype(jnp.float32), axis=(1, 2))  # AdaptiveAvgPool2d + flatten
    # (1,2048)@(2048,5) is degenerate for the MXU; plain XLA is strictly cheaper.
    label_pre = feat @ P["fc1"]["w"] + P["fc1"]["b"]

    return label_pre, jnp.transpose(out, (0, 3, 1, 2))    # back to NCHW


# ---------------------------------------------------------------------------
if __name__ == "__main__":
    # 192 is the smallest spatial size the module supports (SPP needs >= 6x6 at
    # 1/32 resolution); batch=1 keeps the example small.
    key = jax.random.PRNGKey(0)
    input_512 = jax.random.normal(key, (1, 3, 192, 192), jnp.float32)

    params = init_params()
    label_pre, out = forward(params, input_512)
    (label_pre, out) = jax.block_until_ready((label_pre, out))

    assert label_pre.shape == (1, 5), label_pre.shape
    assert out.shape == (1, 3, 192, 192), out.shape
    assert bool(jnp.all(jnp.isfinite(label_pre))) and bool(jnp.all(jnp.isfinite(out)))
    print("KERNEL_OK")
</pallas_src>

<mosaic_0001>
module attributes {stable_mosaic.version = 11 : i64} {
  func.func @_mm_kernel_single(%arg0: i32, %arg1: i32, %arg2: memref<512x256xbf16, #tpu.memory_space<vmem>>, %arg3: memref<256x128xbf16, #tpu.memory_space<vmem>>, %arg4: memref<512x128xbf16, #tpu.memory_space<vmem>>, %arg5: memref<1x1x128xf32, #tpu.memory_space<vmem>>, %arg6: memref<1x1x128xf32, #tpu.memory_space<vmem>>) attributes {dimension_semantics = [#tpu.dimension_semantics<parallel>, #tpu.dimension_semantics<parallel>], iteration_bounds = array<i64: 18, 1>, scalar_prefetch = 0 : i64, scratch_operands = 0 : i64, tpu.core_type = #tpu.core_type<tc>, window_params = [{transform_indices = @transform_0, window_bounds = array<i64: 512, 256>}, {transform_indices = @transform_1, window_bounds = array<i64: 256, 128>}, {transform_indices = @transform_2, window_bounds = array<i64: 512, 128>}, {transform_indices = @transform_3, window_bounds = array<i64: 1, 1, 128>}, {transform_indices = @transform_4, window_bounds = array<i64: 1, 1, 128>}]} {
    %c0 = arith.constant 0 : index
    %c0_0 = arith.constant 0 : index
    %0 = vector.load %arg2[%c0, %c0_0] : memref<512x256xbf16, #tpu.memory_space<vmem>>, vector<512x256xbf16>
    %c0_1 = arith.constant 0 : index
    %c0_2 = arith.constant 0 : index
    %1 = vector.load %arg3[%c0_1, %c0_2] : memref<256x128xbf16, #tpu.memory_space<vmem>>, vector<256x128xbf16>
    %cst = arith.constant dense<0.000000e+00> : vector<512x128xf32>
    %2 = tpu.matmul %0, %1, %cst {dimension_numbers = #tpu.dot_dimension_numbers<[1], [0], [0], [1], [0, 0, 1, 1], [], []>} : vector<512x256xbf16>, vector<256x128xbf16>, vector<512x128xf32> -> vector<512x128xf32>
    %cst_3 = arith.constant dense<0.000000e+00> : vector<128xf32>
    %3 = vector.multi_reduction <add>, %2, %cst_3 [0] : vector<512x128xf32> to vector<128xf32>
    %4 = vector.shape_cast %3 : vector<128xf32> to vector<1x128xf32>
    %5 = vector.shape_cast %4 : vector<1x128xf32> to vector<1x1x128xf32>
    %c0_4 = arith.constant 0 : index
    %c0_5 = arith.constant 0 : index
    %c0_6 = arith.constant 0 : index
    %6 = vector.load %arg5[%c0_4, %c0_5, %c0_6] : memref<1x1x128xf32, #tpu.memory_space<vmem>>, vector<1x1x128xf32>
    tpu.vector_store %arg5[%c0_4, %c0_5, %c0_6], %5 {strides = array<i32>} : memref<1x1x128xf32, #tpu.memory_space<vmem>>, vector<1x1x128xf32>,
    %7 = arith.mulf %2, %2 : vector<512x128xf32>
    %cst_7 = arith.constant dense<0.000000e+00> : vector<128xf32>
    %8 = vector.multi_reduction <add>, %7, %cst_7 [0] : vector<512x128xf32> to vector<128xf32>
    %9 = vector.shape_cast %8 : vector<128xf32> to vector<1x128xf32>
    %10 = vector.shape_cast %9 : vector<1x128xf32> to vector<1x1x128xf32>
    %c0_8 = arith.constant 0 : index
    %c0_9 = arith.constant 0 : index
    %c0_10 = arith.constant 0 : index
    %11 = vector.load %arg6[%c0_8, %c0_9, %c0_10] : memref<1x1x128xf32, #tpu.memory_space<vmem>>, vector<1x1x128xf32>
    tpu.vector_store %arg6[%c0_8, %c0_9, %c0_10], %10 {strides = array<i32>} : memref<1x1x128xf32, #tpu.memory_space<vmem>>, vector<1x1x128xf32>,
    %12 = arith.truncf %2 : vector<512x128xf32> to vector<512x128xbf16>
    %c0_11 = arith.constant 0 : index
    %c0_12 = arith.constant 0 : index
    %13 = vector.load %arg4[%c0_11, %c0_12] : memref<512x128xbf16, #tpu.memory_space<vmem>>, vector<512x128xbf16>
    tpu.vector_store %arg4[%c0_11, %c0_12], %12 {strides = array<i32>} : memref<512x128xbf16, #tpu.memory_space<vmem>>, vector<512x128xbf16>,
    return
  }
  func.func @transform_0(%arg0: i32, %arg1: i32) -> (i32, i32) {
    %c0_i32 = arith.constant 0 : i32
    %c0_i32_0 = arith.constant 0 : i32
    return %arg0, %c0_i32 : i32, i32
  }
  func.func @transform_1(%arg0: i32, %arg1: i32) -> (i32, i32) {
    %c0_i32 = arith.constant 0 : i32
    %c0_i32_0 = arith.constant 0 : i32
    return %c0_i32, %arg1 : i32, i32
  }
  func.func @transform_2(%arg0: i32, %arg1: i32) -> (i32, i32) {
    %c0_i32 = arith.constant 0 : i32
    return %arg0, %arg1 : i32, i32
  }
  func.func @transform_3(%arg0: i32, %arg1: i32) -> (i32, i32, i32) {
    %c0_i32 = arith.constant 0 : i32
    %c0_i32_0 = arith.constant 0 : i32
    return %arg0, %c0_i32, %arg1 : i32, i32, i32
  }
  func.func @transform_4(%arg0: i32, %arg1: i32) -> (i32, i32, i32) {
    %c0_i32 = arith.constant 0 : i32
    %c0_i32_0 = arith.constant 0 : i32
    return %arg0, %c0_i32, %arg1 : i32, i32, i32
  }
}

</mosaic_0001>

<llo_original>
// kernel: conv2d.1
$region0: #{conv2d.1}
  #allocation0 [shape = 'u32[]', space=smem, size = 0x4, offset = 0x4, fixed_abs, tag = 'smem constant byte address 0x4 - core index']
  #allocation1 [shape = 'u32[144,128]{1,0:T(1,128)}', space=vmem, size = 0x12000, scoped, tag = 'internal scratch']
  %s0 = inlined_call_operand.vmem [shape: bf16[9216,256], index: 0, kind: input, shape index: {}]
  %s1 = inlined_call_operand.vmem [shape: bf16[256,128], index: 1, kind: input, shape index: {}]
  %s2 = inlined_call_operand.vmem [shape: bf16[9216,128], index: 2, kind: output, shape index: {0}]
  %s3 = inlined_call_operand.vmem [shape: f32[18,1,128], index: 3, kind: output, shape index: {1}]
  %s4 = inlined_call_operand.vmem [shape: f32[18,1,128], index: 4, kind: output, shape index: {2}]
  %5 = xla_tuple %s2, %s3, %s4
  %s6 = sld [smem:[#allocation0]]
  $region57: #{conv2d.1} parent=0
    _
  %s8 = ssub.s32 1, %s6
  %s9 = scalar_select 0, %s8, %s6
  loop: start=0, step=1, limit=20
  $region2: #{conv2d.1} parent=0 // loop_pre_header
    _
  $region3: #{conv2d.1} parent=0 // loop_header
    %s11 = sphi 0, %s15
    %p12 = scmp.ge.s32.totalorder %s11, 20
    %s18 = sphi 0, %s30
    %s19 = sphi 0, %s26
    %s20 = sphi 0, %s18
    %s21 = sphi 0, %s19
    %s22 = sphi 0, %s20
    %s23 = sphi 0, %s21
    %s33 = sphi 0, %s35
    %s36 = sphi 0, %s33
    %s37 = sphi 0, %s36
    %s53 = sphi 0, %s37
    %s59 = sphi 0, %s61
    %s62 = sphi 0, %s59
    %s63 = sphi 0, %s62
    %s79 = sphi 0, %s63
    %s87 = sphi 0, %s89
    %s90 = sphi 0, %s87
    %s91 = sphi 0, %s90
    %s107 = sphi 0, %s91
    %s115 = sphi 0, %s117
    %s118 = sphi 0, %s115
    %s119 = sphi 0, %s118
    %s135 = sphi 0, %s119
    %s143 = sphi 0, %s145
    %s146 = sphi 0, %s143
    %s147 = sphi 0, %s146
    %s163 = sphi 0, %s147
  $region4: #{conv2d.1} parent=0 // loop_header_branch
    %14 = sbr.rel (%p12) target = $region8
  $region5: #{conv2d.1} parent=0 // loop_body
    %s16 = ssub.s32 %s11, 1
    %s17 = ssub.s32 %s11, 2
    %s24 = sadd.s32 1, %s19
    %p25 = scmp.ge.s32.totalorder %s24, 1
    %s26 = scalar_select %p25, 0, %s24
    %s27 = sadd.s32 1, %s18
    %s28 = scalar_select %p25, %s27, %s18
    %p29 = scmp.ge.s32.totalorder %s28, 18
    %s30 = scalar_select %p29, 0, %s28
    %s31 = ssub.s32 %s18, %s30
    %p32 = scmp.eq.s32.totalorder %s31, 0
    %s34 = sadd.s32 %s33, 1
    %s35 = scalar_select %p32, %s33, %s34
    %p38 = pneg %p32
    %p39 = scmp.eq.s32.totalorder %s11, 17
    %p40 = por %p38, %p39
    %p41 = scmp.ne.s32.totalorder %s33, %s36
    %p42 = scmp.eq.s32.totalorder %s11, 0
    %p43 = por %p41, %p42
    %p44 = scmp.ne.s32.totalorder %s33, %s36
    %p45 = scmp.eq.s32.totalorder %s16, 17
    %p46 = por %p44, %p45
    %p47 = scmp.ne.s32.totalorder %s36, %s37
    %p48 = scmp.eq.s32.totalorder %s16, 0
    %p49 = por %p47, %p48
    %p50 = scmp.ne.s32.totalorder %s36, %s37
    %p51 = scmp.eq.s32.totalorder %s17, 17
    %p52 = por %p50, %p51
    %p54 = scmp.ne.s32.totalorder %s37, %s53
    %p55 = scmp.eq.s32.totalorder %s17, 0
    %p56 = por %p54, %p55
    %s57 = ssub.s32 %s19, %s26
    %p58 = scmp.eq.s32.totalorder %s57, 0
    %s60 = sadd.s32 %s59, 1
    %s61 = scalar_select %p58, %s59, %s60
    %p64 = pneg %p58
    %p65 = scmp.eq.s32.totalorder %s11, 17
    %p66 = por %p64, %p65
    %p67 = scmp.ne.s32.totalorder %s59, %s62
    %p68 = scmp.eq.s32.totalorder %s11, 0
    %p69 = por %p67, %p68
    %p70 = scmp.ne.s32.totalorder %s59, %s62
    %p71 = scmp.eq.s32.totalorder %s16, 17
    %p72 = por %p70, %p71
    %p73 = scmp.ne.s32.totalorder %s62, %s63
    %p74 = scmp.eq.s32.totalorder %s16, 0
    %p75 = por %p73, %p74
    %p76 = scmp.ne.s32.totalorder %s62, %s63
    %p77 = scmp.eq.s32.totalorder %s17, 17
    %p78 = por %p76, %p77
    %p80 = scmp.ne.s32.totalorder %s63, %s79
    %p81 = scmp.eq.s32.totalorder %s17, 0
    %p82 = por %p80, %p81
    %s83 = ssub.s32 %s18, %s30
    %s84 = ssub.s32 %s19, %s26
    %s85 = sor.u32 %s83, %s84
    %p86 = scmp.eq.s32.totalorder %s85, 0
    %s88 = sadd.s32 %s87, 1
    %s89 = scalar_select %p86, %s87, %s88
    %p92 = pneg %p86
    %p93 = scmp.eq.s32.totalorder %s11, 17
    %p94 = por %p92, %p93
    %p95 = scmp.ne.s32.totalorder %s87, %s90
    %p96 = scmp.eq.s32.totalorder %s11, 0
    %p97 = por %p95, %p96
    %p98 = scmp.ne.s32.totalorder %s87, %s90
    %p99 = scmp.eq.s32.totalorder %s16, 17
    %p100 = por %p98, %p99
    %p101 = scmp.ne.s32.totalorder %s90, %s91
    %p102 = scmp.eq.s32.totalorder %s16, 0
    %p103 = por %p101, %p102
    %p104 = scmp.ne.s32.totalorder %s90, %s91
    %p105 = scmp.eq.s32.totalorder %s17, 17
    %p106 = por %p104, %p105
    %p108 = scmp.ne.s32.totalorder %s91, %s107
    %p109 = scmp.eq.s32.totalorder %s17, 0
    %p110 = por %p108, %p109
    %s111 = ssub.s32 %s18, %s30
    %s112 = ssub.s32 %s19, %s26
    %s113 = sor.u32 %s111, %s112
    %p114 = scmp.eq.s32.totalorder %s113, 0
    %s116 = sadd.s32 %s115, 1
    %s117 = scalar_select %p114, %s115, %s116
    %p120 = pneg %p114
    %p121 = scmp.eq.s32.totalorder %s11, 17
    %p122 = por %p120, %p121
    %p123 = scmp.ne.s32.totalorder %s115, %s118
    %p124 = scmp.eq.s32.totalorder %s11, 0
    %p125 = por %p123, %p124
    %p126 = scmp.ne.s32.totalorder %s115, %s118
    %p127 = scmp.eq.s32.totalorder %s16, 17
    %p128 = por %p126, %p127
    %p129 = scmp.ne.s32.totalorder %s118, %s119
    %p130 = scmp.eq.s32.totalorder %s16, 0
    %p131 = por %p129, %p130
    %p132 = scmp.ne.s32.totalorder %s118, %s119
    %p133 = scmp.eq.s32.totalorder %s17, 17
    %p134 = por %p132, %p133
    %p136 = scmp.ne.s32.totalorder %s119, %s135
    %p137 = scmp.eq.s32.totalorder %s17, 0
    %p138 = por %p136, %p137
    %s139 = ssub.s32 %s18, %s30
    %s140 = ssub.s32 %s19, %s26
    %s141 = sor.u32 %s139, %s140
    %p142 = scmp.eq.s32.totalorder %s141, 0
    %s144 = sadd.s32 %s143, 1
    %s145 = scalar_select %p142, %s143, %s144
    %p148 = pneg %p142
    %p149 = scmp.eq.s32.totalorder %s11, 17
    %p150 = por %p148, %p149
    %p151 = scmp.ne.s32.totalorder %s143, %s146
    %p152 = scmp.eq.s32.totalorder %s11, 0
    %p153 = por %p151, %p152
    %p154 = scmp.ne.s32.totalorder %s143, %s146
    %p155 = scmp.eq.s32.totalorder %s16, 17
    %p156 = por %p154, %p155
    %p157 = scmp.ne.s32.totalorder %s146, %s147
    %p158 = scmp.eq.s32.totalorder %s16, 0
    %p159 = por %p157, %p158
    %p160 = scmp.ne.s32.totalorder %s146, %s147
    %p161 = scmp.eq.s32.totalorder %s17, 17
    %p162 = por %p160, %p161
    %p164 = scmp.ne.s32.totalorder %s147, %s163
    %p165 = scmp.eq.s32.totalorder %s17, 0
    %p166 = por %p164, %p165
    %p167 = scmp.le.s32.totalorder 1, %s11
    %p168 = scmp.lt.s32.totalorder %s11, 19
    %p169 = pnand %p167, %p168
    %p170 = pneg %p169
    // Predicated region
    $region9: #{conv2d.1} parent=5 // pred_check
      _
    $region10: #{conv2d.1} parent=5 // pred_check_branch
      %172 = sbr.rel (%p169) target = $region12
    $region11: #{conv2d.1} parent=5 // pred_region
      %s173 = ssub.s32 %s11, 1
      // Predicated region
      $region13: #{conv2d.1} parent=11 // pred_check
        %p174 = pneg %p75
      $region14: #{conv2d.1} parent=11 // pred_check_branch
        %176 = sbr.rel (%p174) target = $region16
      $region15: #{conv2d.1} parent=11 // pred_region
        %p177 = scmp.lt.s32.totalorder %s21, 0
        %s178 = scalar_select %p177, %s21, 0
        %s179 = smul.addr %s178, 4
        %s180 = scalar_lea.vmem %s1, %s179
      $region16: #{conv2d.1} parent=11 // pred_fallthru
        _
    $region12: #{conv2d.1} parent=5 // pred_fallthru
      _
    %p181 = scmp.lt.s32.totalorder %s11, 18
    // Predicated region
    $region17: #{conv2d.1} parent=5 // pred_check
      %p182 = pneg %p181
    $region18: #{conv2d.1} parent=5 // pred_check_branch
      %184 = sbr.rel (%p182) target = $region20
    $region19: #{conv2d.1} parent=5 // pred_region
      // Predicated region
      $region21: #{conv2d.1} parent=19 // pred_check
        %p185 = pneg %p43
      $region22: #{conv2d.1} parent=19 // pred_check_branch
        %187 = sbr.rel (%p185) target = $region24
      $region23: #{conv2d.1} parent=19 // pred_region
        %s188 = smul.u32 64, %s18
        %p189 = scmp.lt.s32.totalorder %s188, 1151
        %s190 = scalar_select %p189, %s188, 1151
        %s191 = smul.addr %s190, 2
        %s192 = smul.addr %s191, 4
        %s193 = scalar_lea.vmem %s0, %s192
        %s194 = smul.u32 64, %s18
      $region24: #{conv2d.1} parent=19 // pred_fallthru
        _
    $region20: #{conv2d.1} parent=5 // pred_fallthru
      _
    %p195 = scmp.le.s32.totalorder 1, %s11
    %p196 = scmp.lt.s32.totalorder %s11, 19
    %p197 = pnand %p195, %p196
    %p198 = pneg %p197
    // Predicated region
    $region25: #{conv2d.1} parent=5 // pred_check
      _
    $region26: #{conv2d.1} parent=5 // pred_check_branch
      %200 = sbr.rel (%p197) target = $region28
    $region27: #{conv2d.1} parent=5 // pred_region
      %s201 = ssub.s32 %s11, 1
      %s202 = smul.u32 64, %s20
      %p203 = scmp.lt.s32.totalorder %s202, 1151
      %s204 = scalar_select %p203, %s202, 1151
      %s205 = smul.addr %s204, 2
      %s206 = smul.addr %s205, 4
      %s207 = scalar_lea.vmem %s0, %s206
      %p208 = pneg %p49
      %p209 = pneg %p46
      %p210 = scmp.lt.s32.totalorder %s21, 0
      %s211 = scalar_select %p210, %s21, 0
      %s212 = smul.addr %s211, 4
      %s213 = scalar_lea.vmem %s1, %s212
      %p214 = pneg %p75
      %p215 = pneg %p72
      %p216 = pneg %p103
      %p217 = pneg %p100
      %s218 = smul.u32 64, %s20
      %p219 = scmp.lt.s32.totalorder %s218, 1151
      %s220 = scalar_select %p219, %s218, 1151
      %p221 = scmp.lt.s32.totalorder %s21, 0
      %s222 = scalar_select %p221, %s21, 0
      %s223 = sadd.s32 %s222, %s220
      %s224 = smul.addr %s223, 4
      %s225 = scalar_lea.vmem %s2, %s224
      %p226 = pneg %p131
      %p227 = pneg %p128
      %p228 = scmp.lt.s32.totalorder %s20, 17
      %s229 = scalar_select %p228, %s20, 17
      %p230 = scmp.lt.s32.totalorder %s21, 0
      %s231 = scalar_select %p230, %s21, 0
      %s232 = sadd.s32 %s231, %s229
      %s233 = scalar_lea.vmem %s3, %s232
      %p234 = pneg %p159
      %p235 = pneg %p156
      %p236 = scmp.lt.s32.totalorder %s20, 17
      %s237 = scalar_select %p236, %s20, 17
      %p238 = scmp.lt.s32.totalorder %s21, 0
      %s239 = scalar_select %p238, %s21, 0
      %s240 = sadd.s32 %s239, %s237
      %s241 = scalar_lea.vmem %s4, %s240
      %s242 = smul.u32 64, %s20
      %p243 = scmp.lt.s32.totalorder %s242, 1151
      %s244 = scalar_select %p243, %s242, 1151
      %s245 = smul.addr %s244, 2
      %s246 = smul.addr %s245, 4
      %s247 = scalar_lea.vmem %s0, %s246
      %s248 = smul.u32 64, %s20
      %p249 = scmp.lt.s32.totalorder %s21, 0
      %s250 = scalar_select %p249, %s21, 0
      %s251 = smul.addr %s250, 4
      %s252 = scalar_lea.vmem %s1, %s251
      %s253 = smul.u32 64, %s20
      %p254 = scmp.lt.s32.totalorder %s253, 1151
      %s255 = scalar_select %p254, %s253, 1151
      %p256 = scmp.lt.s32.totalorder %s21, 0
      %s257 = scalar_select %p256, %s21, 0
      %s258 = sadd.s32 %s257, %s255
      %s259 = smul.addr %s258, 4
      %s260 = scalar_lea.vmem %s2, %s259
      %s261 = smul.u32 64, %s20
      %p262 = scmp.lt.s32.totalorder %s20, 17
      %s263 = scalar_select %p262, %s20, 17
      %p264 = scmp.lt.s32.totalorder %s21, 0
      %s265 = scalar_select %p264, %s21, 0
      %s266 = sadd.s32 %s265, %s263
      %s267 = scalar_lea.vmem %s3, %s266
      %p268 = scmp.lt.s32.totalorder %s20, 17
      %s269 = scalar_select %p268, %s20, 17
      %p270 = scmp.lt.s32.totalorder %s21, 0
      %s271 = scalar_select %p270, %s21, 0
      %s272 = sadd.s32 %s271, %s269
      %s273 = scalar_lea.vmem %s4, %s272
      %v275 = vld [vmem:[%s247] sm:$0xff]
      %v276 = vld [vmem:[%s247 + $0x8] sm:$0xff]
      %v277 = vld [vmem:[%s247 + $0x10] sm:$0xff]
      %v278 = vld [vmem:[%s247 + $0x18] sm:$0xff]
      %v279 = vld [vmem:[%s247 + $0x20] sm:$0xff]
      %v280 = vld [vmem:[%s247 + $0x28] sm:$0xff]
      %v281 = vld [vmem:[%s247 + $0x30] sm:$0xff]
      %v282 = vld [vmem:[%s247 + $0x38] sm:$0xff]
      %v283 = vld [vmem:[%s247 + $0x40] sm:$0xff]
      %v284 = vld [vmem:[%s247 + $0x48] sm:$0xff]
      %v285 = vld [vmem:[%s247 + $0x50] sm:$0xff]
      %v286 = vld [vmem:[%s247 + $0x58] sm:$0xff]
      %v287 = vld [vmem:[%s247 + $0x60] sm:$0xff]
      %v288 = vld [vmem:[%s247 + $0x68] sm:$0xff]
      %v289 = vld [vmem:[%s247 + $0x70] sm:$0xff]
      %v290 = vld [vmem:[%s247 + $0x78] sm:$0xff]
      %v291 = vld [vmem:[%s247 + $0x80] sm:$0xff]
      %v292 = vld [vmem:[%s247 + $0x88] sm:$0xff]
      %v293 = vld [vmem:[%s247 + $0x90] sm:$0xff]
      %v294 = vld [vmem:[%s247 + $0x98] sm:$0xff]
      %v295 = vld [vmem:[%s247 + $0xa0] sm:$0xff]
      %v296 = vld [vmem:[%s247 + $0xa8] sm:$0xff]
      %v297 = vld [vmem:[%s247 + $0xb0] sm:$0xff]
      %v298 = vld [vmem:[%s247 + $0xb8] sm:$0xff]
      %v299 = vld [vmem:[%s247 + $0xc0] sm:$0xff]
      %v300 = vld [vmem:[%s247 + $0xc8] sm:$0xff]
      %v301 = vld [vmem:[%s247 + $0xd0] sm:$0xff]
      %v302 = vld [vmem:[%s247 + $0xd8] sm:$0xff]
      %v303 = vld [vmem:[%s247 + $0xe0] sm:$0xff]
      %v304 = vld [vmem:[%s247 + $0xe8] sm:$0xff]
      %v305 = vld [vmem:[%s247 + $0xf0] sm:$0xff]
      %v306 = vld [vmem:[%s247 + $0xf8] sm:$0xff]
      %v307 = vld [vmem:[%s247 + $0x100] sm:$0xff]
      %v308 = vld [vmem:[%s247 + $0x108] sm:$0xff]
      %v309 = vld [vmem:[%s247 + $0x110] sm:$0xff]
      %v310 = vld [vmem:[%s247 + $0x118] sm:$0xff]
      %v311 = vld [vmem:[%s247 + $0x120] sm:$0xff]
      %v312 = vld [vmem:[%s247 + $0x128] sm:$0xff]
      %v313 = vld [vmem:[%s247 + $0x130] sm:$0xff]
      %v314 = vld [vmem:[%s247 + $0x138] sm:$0xff]
      %v315 = vld [vmem:[%s247 + $0x140] sm:$0xff]
      %v316 = vld [vmem:[%s247 + $0x148] sm:$0xff]
      %v317 = vld [vmem:[%s247 + $0x150] sm:$0xff]
      %v318 = vld [vmem:[%s247 + $0x158] sm:$0xff]
      %v319 = vld [vmem:[%s247 + $0x160] sm:$0xff]
      %v320 = vld [vmem:[%s247 + $0x168] sm:$0xff]
      %v321 = vld [vmem:[%s247 + $0x170] sm:$0xff]
      %v322 = vld [vmem:[%s247 + $0x178] sm:$0xff]
      %v323 = vld [vmem:[%s247 + $0x180] sm:$0xff]
      %v324 = vld [vmem:[%s247 + $0x188] sm:$0xff]
      %v325 = vld [vmem:[%s247 + $0x190] sm:$0xff]
      %v326 = vld [vmem:[%s247 + $0x198] sm:$0xff]
      %v327 = vld [vmem:[%s247 + $0x1a0] sm:$0xff]
      %v328 = vld [vmem:[%s247 + $0x1a8] sm:$0xff]
      %v329 = vld [vmem:[%s247 + $0x1b0] sm:$0xff]
      %v330 = vld [vmem:[%s247 + $0x1b8] sm:$0xff]
      %v331 = vld [vmem:[%s247 + $0x1c0] sm:$0xff]
      %v332 = vld [vmem:[%s247 + $0x1c8] sm:$0xff]
      %v333 = vld [vmem:[%s247 + $0x1d0] sm:$0xff]
      %v334 = vld [vmem:[%s247 + $0x1d8] sm:$0xff]
      %v335 = vld [vmem:[%s247 + $0x1e0] sm:$0xff]
      %v336 = vld [vmem:[%s247 + $0x1e8] sm:$0xff]
      %v337 = vld [vmem:[%s247 + $0x1f0] sm:$0xff]
      %v338 = vld [vmem:[%s247 + $0x1f8] sm:$0xff]
      %v339 = vld [vmem:[%s252] sm:$0xf]
      %v340 = vld [vmem:[%s252 + $0x4] sm:$0xf]
      %v341 = vld [vmem:[%s252 + $0x8] sm:$0xf]
      %v342 = vld [vmem:[%s252 + $0xc] sm:$0xf]
      %v343 = vld [vmem:[%s252 + $0x10] sm:$0xf]
      %v344 = vld [vmem:[%s252 + $0x14] sm:$0xf]
      %v345 = vld [vmem:[%s252 + $0x18] sm:$0xf]
      %v346 = vld [vmem:[%s252 + $0x1c] sm:$0xf]
      %v347 = vld [vmem:[%s252 + $0x20] sm:$0xf]
      %v348 = vld [vmem:[%s252 + $0x24] sm:$0xf]
      %v349 = vld [vmem:[%s252 + $0x28] sm:$0xf]
      %v350 = vld [vmem:[%s252 + $0x2c] sm:$0xf]
      %v351 = vld [vmem:[%s252 + $0x30] sm:$0xf]
      %v352 = vld [vmem:[%s252 + $0x34] sm:$0xf]
      %v353 = vld [vmem:[%s252 + $0x38] sm:$0xf]
      %v354 = vld [vmem:[%s252 + $0x3c] sm:$0xf]
      %v355 = vld [vmem:[%s252 + $0x40] sm:$0xf]
      %v356 = vld [vmem:[%s252 + $0x44] sm:$0xf]
      %v357 = vld [vmem:[%s252 + $0x48] sm:$0xf]
      %v358 = vld [vmem:[%s252 + $0x4c] sm:$0xf]
      %v359 = vld [vmem:[%s252 + $0x50] sm:$0xf]
      %v360 = vld [vmem:[%s252 + $0x54] sm:$0xf]
      %v361 = vld [vmem:[%s252 + $0x58] sm:$0xf]
      %v362 = vld [vmem:[%s252 + $0x5c] sm:$0xf]
      %v363 = vld [vmem:[%s252 + $0x60] sm:$0xf]
      %v364 = vld [vmem:[%s252 + $0x64] sm:$0xf]
      %v365 = vld [vmem:[%s252 + $0x68] sm:$0xf]
      %v366 = vld [vmem:[%s252 + $0x6c] sm:$0xf]
      %v367 = vld [vmem:[%s252 + $0x70] sm:$0xf]
      %v368 = vld [vmem:[%s252 + $0x74] sm:$0xf]
      %v369 = vld [vmem:[%s252 + $0x78] sm:$0xf]
      %v370 = vld [vmem:[%s252 + $0x7c] sm:$0xf]
      %v435 = vunpack.c.l.b16 %v275
      %v436 = vunpack.c.h.b16 %v275
      %v437 = vunpack.c.l.b16 %v276
      %v438 = vunpack.c.h.b16 %v276
      %v439 = vunpack.c.l.b16 %v277
      %v440 = vunpack.c.h.b16 %v277
      %v441 = vunpack.c.l.b16 %v278
      %v442 = vunpack.c.h.b16 %v278
      %v443 = vunpack.c.l.b16 %v279
      %v444 = vunpack.c.h.b16 %v279
      %v445 = vunpack.c.l.b16 %v280
      %v446 = vunpack.c.h.b16 %v280
      %v447 = vunpack.c.l.b16 %v281
      %v448 = vunpack.c.h.b16 %v281
      %v449 = vunpack.c.l.b16 %v282
      %v450 = vunpack.c.h.b16 %v282
      %v451 = vunpack.c.l.b16 %v283
      %v452 = vunpack.c.h.b16 %v283
      %v453 = vunpack.c.l.b16 %v284
      %v454 = vunpack.c.h.b16 %v284
      %v455 = vunpack.c.l.b16 %v285
      %v456 = vunpack.c.h.b16 %v285
      %v457 = vunpack.c.l.b16 %v286
      %v458 = vunpack.c.h.b16 %v286
      %v459 = vunpack.c.l.b16 %v287
      %v460 = vunpack.c.h.b16 %v287
      %v461 = vunpack.c.l.b16 %v288
      %v462 = vunpack.c.h.b16 %v288
      %v463 = vunpack.c.l.b16 %v289
      %v464 = vunpack.c.h.b16 %v289
      %v465 = vunpack.c.l.b16 %v290
      %v466 = vunpack.c.h.b16 %v290
      %v467 = vunpack.c.l.b16 %v291
      %v468 = vunpack.c.h.b16 %v291
      %v469 = vunpack.c.l.b16 %v292
      %v470 = vunpack.c.h.b16 %v292
      %v471 = vunpack.c.l.b16 %v293
      %v472 = vunpack.c.h.b16 %v293
      %v473 = vunpack.c.l.b16 %v294
      %v474 = vunpack.c.h.b16 %v294
      %v475 = vunpack.c.l.b16 %v295
      %v476 = vunpack.c.h.b16 %v295
      %v477 = vunpack.c.l.b16 %v296
      %v478 = vunpack.c.h.b16 %v296
      %v479 = vunpack.c.l.b16 %v297
      %v480 = vunpack.c.h.b16 %v297
      %v481 = vunpack.c.l.b16 %v298
      %v482 = vunpack.c.h.b16 %v298
      %v483 = vunpack.c.l.b16 %v299
      %v484 = vunpack.c.h.b16 %v299
      %v485 = vunpack.c.l.b16 %v300
      %v486 = vunpack.c.h.b16 %v300
      %v487 = vunpack.c.l.b16 %v301
      %v488 = vunpack.c.h.b16 %v301
      %v489 = vunpack.c.l.b16 %v302
      %v490 = vunpack.c.h.b16 %v302
      %v491 = vunpack.c.l.b16 %v303
      %v492 = vunpack.c.h.b16 %v303
      %v493 = vunpack.c.l.b16 %v304
      %v494 = vunpack.c.h.b16 %v304
      %v495 = vunpack.c.l.b16 %v305
      %v496 = vunpack.c.h.b16 %v305
      %v497 = vunpack.c.l.b16 %v306
      %v498 = vunpack.c.h.b16 %v306
      %v499 = vunpack.c.l.b16 %v307
      %v500 = vunpack.c.h.b16 %v307
      %v501 = vunpack.c.l.b16 %v308
      %v502 = vunpack.c.h.b16 %v308
      %v503 = vunpack.c.l.b16 %v309
      %v504 = vunpack.c.h.b16 %v309
      %v505 = vunpack.c.l.b16 %v310
      %v506 = vunpack.c.h.b16 %v310
      %v507 = vunpack.c.l.b16 %v311
      %v508 = vunpack.c.h.b16 %v311
      %v509 = vunpack.c.l.b16 %v312
      %v510 = vunpack.c.h.b16 %v312
      %v511 = vunpack.c.l.b16 %v313
      %v512 = vunpack.c.h.b16 %v313
      %v513 = vunpack.c.l.b16 %v314
      %v514 = vunpack.c.h.b16 %v314
      %v515 = vunpack.c.l.b16 %v315
      %v516 = vunpack.c.h.b16 %v315
      %v517 = vunpack.c.l.b16 %v316
      %v518 = vunpack.c.h.b16 %v316
      %v519 = vunpack.c.l.b16 %v317
      %v520 = vunpack.c.h.b16 %v317
      %v521 = vunpack.c.l.b16 %v318
      %v522 = vunpack.c.h.b16 %v318
      %v523 = vunpack.c.l.b16 %v319
      %v524 = vunpack.c.h.b16 %v319
      %v525 = vunpack.c.l.b16 %v320
      %v526 = vunpack.c.h.b16 %v320
      %v527 = vunpack.c.l.b16 %v321
      %v528 = vunpack.c.h.b16 %v321
      %v529 = vunpack.c.l.b16 %v322
      %v530 = vunpack.c.h.b16 %v322
      %v531 = vunpack.c.l.b16 %v323
      %v532 = vunpack.c.h.b16 %v323
      %v533 = vunpack.c.l.b16 %v324
      %v534 = vunpack.c.h.b16 %v324
      %v535 = vunpack.c.l.b16 %v325
      %v536 = vunpack.c.h.b16 %v325
      %v537 = vunpack.c.l.b16 %v326
      %v538 = vunpack.c.h.b16 %v326
      %v539 = vunpack.c.l.b16 %v327
      %v540 = vunpack.c.h.b16 %v327
      %v541 = vunpack.c.l.b16 %v328
      %v542 = vunpack.c.h.b16 %v328
      %v543 = vunpack.c.l.b16 %v329
      %v544 = vunpack.c.h.b16 %v329
      %v545 = vunpack.c.l.b16 %v330
      %v546 = vunpack.c.h.b16 %v330
      %v547 = vunpack.c.l.b16 %v331
      %v548 = vunpack.c.h.b16 %v331
      %v549 = vunpack.c.l.b16 %v332
      %v550 = vunpack.c.h.b16 %v332
      %v551 = vunpack.c.l.b16 %v333
      %v552 = vunpack.c.h.b16 %v333
      %v553 = vunpack.c.l.b16 %v334
      %v554 = vunpack.c.h.b16 %v334
      %v555 = vunpack.c.l.b16 %v335
      %v556 = vunpack.c.h.b16 %v335
      %v557 = vunpack.c.l.b16 %v336
      %v558 = vunpack.c.h.b16 %v336
      %v559 = vunpack.c.l.b16 %v337
      %v560 = vunpack.c.h.b16 %v337
      %v561 = vunpack.c.l.b16 %v338
      %v562 = vunpack.c.h.b16 %v338
      %v563 = vpack.c.b16 %v437, %v435
      %v564 = vpack.c.b16 %v438, %v436
      %v565 = vpack.c.b16 %v441, %v439
      %v566 = vpack.c.b16 %v442, %v440
      %v567 = vpack.c.b16 %v445, %v443
      %v568 = vpack.c.b16 %v446, %v444
      %v569 = vpack.c.b16 %v449, %v447
      %v570 = vpack.c.b16 %v450, %v448
      %v571 = vpack.c.b16 %v453, %v451
      %v572 = vpack.c.b16 %v454, %v452
      %v573 = vpack.c.b16 %v457, %v455
      %v574 = vpack.c.b16 %v458, %v456
      %v575 = vpack.c.b16 %v461, %v459
      %v576 = vpack.c.b16 %v462, %v460
      %v577 = vpack.c.b16 %v465, %v463
      %v578 = vpack.c.b16 %v466, %v464
      %v579 = vpack.c.b16 %v469, %v467
      %v580 = vpack.c.b16 %v470, %v468
      %v581 = vpack.c.b16 %v473, %v471
      %v582 = vpack.c.b16 %v474, %v472
      %v583 = vpack.c.b16 %v477, %v475
      %v584 = vpack.c.b16 %v478, %v476
      %v585 = vpack.c.b16 %v481, %v479
      %v586 = vpack.c.b16 %v482, %v480
      %v587 = vpack.c.b16 %v485, %v483
      %v588 = vpack.c.b16 %v486, %v484
      %v589 = vpack.c.b16 %v489, %v487
      %v590 = vpack.c.b16 %v490, %v488
      %v591 = vpack.c.b16 %v493, %v491
      %v592 = vpack.c.b16 %v494, %v492
      %v593 = vpack.c.b16 %v497, %v495
      %v594 = vpack.c.b16 %v498, %v496
      %v595 = vpack.c.b16 %v501, %v499
      %v596 = vpack.c.b16 %v502, %v500
      %v597 = vpack.c.b16 %v505, %v503
      %v598 = vpack.c.b16 %v506, %v504
      %v599 = vpack.c.b16 %v509, %v507
      %v600 = vpack.c.b16 %v510, %v508
      %v601 = vpack.c.b16 %v513, %v511
      %v602 = vpack.c.b16 %v514, %v512
      %v603 = vpack.c.b16 %v517, %v515
      %v604 = vpack.c.b16 %v518, %v516
      %v605 = vpack.c.b16 %v521, %v519
      %v606 = vpack.c.b16 %v522, %v520
      %v607 = vpack.c.b16 %v525, %v523
      %v608 = vpack.c.b16 %v526, %v524
      %v609 = vpack.c.b16 %v529, %v527
      %v610 = vpack.c.b16 %v530, %v528
      %v611 = vpack.c.b16 %v533, %v531
      %v612 = vpack.c.b16 %v534, %v532
      %v613 = vpack.c.b16 %v537, %v535
      %v614 = vpack.c.b16 %v538, %v536
      %v615 = vpack.c.b16 %v541, %v539
      %v616 = vpack.c.b16 %v542, %v540
      %v617 = vpack.c.b16 %v545, %v543
      %v618 = vpack.c.b16 %v546, %v544
      %v619 = vpack.c.b16 %v549, %v547
      %v620 = vpack.c.b16 %v550, %v548
      %v621 = vpack.c.b16 %v553, %v551
      %v622 = vpack.c.b16 %v554, %v552
      %v623 = vpack.c.b16 %v557, %v555
      %v624 = vpack.c.b16 %v558, %v556
      %v625 = vpack.c.b16 %v561, %v559
      %v626 = vpack.c.b16 %v562, %v560
      %v723 = vunpack.c.l.b16 %v339
      %v724 = vunpack.c.l.b16 %v340
      %v725 = vunpack.c.l.b16 %v341
      %v726 = vunpack.c.l.b16 %v342
      %v727 = vunpack.c.l.b16 %v343
      %v728 = vunpack.c.l.b16 %v344
      %v729 = vunpack.c.l.b16 %v345
      %v730 = vunpack.c.l.b16 %v346
      %v731 = vunpack.c.l.b16 %v347
      %v732 = vunpack.c.l.b16 %v348
      %v733 = vunpack.c.l.b16 %v349
      %v734 = vunpack.c.l.b16 %v350
      %v735 = vunpack.c.l.b16 %v351
      %v736 = vunpack.c.l.b16 %v352
      %v737 = vunpack.c.l.b16 %v353
      %v738 = vunpack.c.l.b16 %v354
      %v739 = vunpack.c.l.b16 %v355
      %v740 = vunpack.c.l.b16 %v356
      %v741 = vunpack.c.l.b16 %v357
      %v742 = vunpack.c.l.b16 %v358
      %v743 = vunpack.c.l.b16 %v359
      %v744 = vunpack.c.l.b16 %v360
      %v745 = vunpack.c.l.b16 %v361
      %v746 = vunpack.c.l.b16 %v362
      %v747 = vunpack.c.l.b16 %v363
      %v748 = vunpack.c.l.b16 %v364
      %v749 = vunpack.c.l.b16 %v365
      %v750 = vunpack.c.l.b16 %v366
      %v751 = vunpack.c.l.b16 %v367
      %v752 = vunpack.c.l.b16 %v368
      %v753 = vunpack.c.l.b16 %v369
      %v754 = vunpack.c.l.b16 %v370
      %v755 = vpack.c.b16 %v724, %v723
      %v756 = vpack.c.b16 %v726, %v725
      %v757 = vpack.c.b16 %v728, %v727
      %v758 = vpack.c.b16 %v730, %v729
      %v759 = vpack.c.b16 %v732, %v731
      %v760 = vpack.c.b16 %v734, %v733
      %v761 = vpack.c.b16 %v736, %v735
      %v762 = vpack.c.b16 %v738, %v737
      %v763 = vpack.c.b16 %v740, %v739
      %v764 = vpack.c.b16 %v742, %v741
      %v765 = vpack.c.b16 %v744, %v743
      %v766 = vpack.c.b16 %v746, %v745
      %v767 = vpack.c.b16 %v748, %v747
      %v768 = vpack.c.b16 %v750, %v749
      %v769 = vpack.c.b16 %v752, %v751
      %v770 = vpack.c.b16 %v754, %v753
      %787 = vmatprep.subr.bf16.mxu0 0
      %788 = vmatpush1.bf16.msra.mxu0 %v762
      %789 = vmatprep.subr.bf16.mxu0 0
      %790 = vmatpush1.bf16.msra.mxu0 %v761
      %791 = vmatprep.subr.bf16.mxu0 0
      %792 = vmatpush1.bf16.msra.mxu0 %v760
      %793 = vmatprep.subr.bf16.mxu0 0
      %794 = vmatpush1.bf16.msra.mxu0 %v759
      %795 = vmatprep.subr.bf16.mxu0 0
      %796 = vmatpush1.bf16.msra.mxu0 %v758
      %797 = vmatprep.subr.bf16.mxu0 0
      %798 = vmatpush1.bf16.msra.mxu0 %v757
      %799 = vmatprep.subr.bf16.mxu0 0
      %800 = vmatpush1.bf16.msra.mxu0 %v756
      %801 = vmatprep.subr.bf16.mxu0 0
      %802 = vmatpush1.bf16.msra.mxu0 %v755
      %803 = vmatprep.subr.bf16.mxu0 0
      %804 = vmatpush2.bf16.msra.mxu0 %v770
      %805 = vmatprep.subr.bf16.mxu0 0
      %806 = vmatpush2.bf16.msra.mxu0 %v769
      %807 = vmatprep.subr.bf16.mxu0 0
      %808 = vmatpush2.bf16.msra.mxu0 %v768
      %809 = vmatprep.subr.bf16.mxu0 0
      %810 = vmatpush2.bf16.msra.mxu0 %v767
      %811 = vmatprep.subr.bf16.mxu0 0
      %812 = vmatpush2.bf16.msra.mxu0 %v766
      %813 = vmatprep.subr.bf16.mxu0 0
      %814 = vmatpush2.bf16.msra.mxu0 %v765
      %815 = vmatprep.subr.bf16.mxu0 0
      %816 = vmatpush2.bf16.msra.mxu0 %v764
      %817 = vmatprep.subr.bf16.mxu0 0
      %818 = vmatpush2.bf16.msra.mxu0 %v763
      %819 = vmatprep.mubr.bf16.mxu0 %v564
      %820 = vmatmul.mubr.bf16.gmra.mxu0 %v563
      %v821 = vpop.f32.mrf.mxu0
      %v822 = vadd.f32 0.0, %v821
      %v823 = vpop.f32.mrf.mxu0
      %v824 = vpop.f32.mrf.mxu0
      %v825 = vadd.f32 0.0, %v824
      %v826 = vpop.f32.mrf.mxu0
      %827 = vmatprep.mubr.bf16.mxu0 %v566
      %828 = vmatmul.mubr.bf16.gmra.mxu0 %v565
      %v829 = vpop.f32.mrf.mxu0
      %v830 = vadd.f32 0.0, %v829
      %v831 = vpop.f32.mrf.mxu0
      %v832 = vpop.f32.mrf.mxu0
      %v833 = vadd.f32 0.0, %v832
      %v834 = vpop.f32.mrf.mxu0
      %835 = vmatprep.mubr.bf16.mxu0 %v568
      %836 = vmatmul.mubr.bf16.gmra.mxu0 %v567
      %v837 = vpop.f32.mrf.mxu0
      %v838 = vadd.f32 0.0, %v837
      %v839 = vpop.f32.mrf.mxu0
      %v840 = vpop.f32.mrf.mxu0
      %v841 = vadd.f32 0.0, %v840
      %v842 = vpop.f32.mrf.mxu0
      %843 = vmatprep.mubr.bf16.mxu0 %v570
      %844 = vmatmul.mubr.bf16.gmra.mxu0 %v569
      %v845 = vpop.f32.mrf.mxu0
      %v846 = vadd.f32 0.0, %v845
      %v847 = vpop.f32.mrf.mxu0
      %v848 = vpop.f32.mrf.mxu0
      %v849 = vadd.f32 0.0, %v848
      %v850 = vpop.f32.mrf.mxu0
      %851 = vmatprep.mubr.bf16.mxu0 %v572
      %852 = vmatmul.mubr.bf16.gmra.mxu0 %v571
      %v853 = vpop.f32.mrf.mxu0
      %v854 = vadd.f32 0.0, %v853
      %v855 = vpop.f32.mrf.mxu0
      %v856 = vpop.f32.mrf.mxu0
      %v857 = vadd.f32 0.0, %v856
      %v858 = vpop.f32.mrf.mxu0
      %859 = vmatprep.mubr.bf16.mxu0 %v574
      %860 = vmatmul.mubr.bf16.gmra.mxu0 %v573
      %v861 = vpop.f32.mrf.mxu0
      %v862 = vadd.f32 0.0, %v861
      %v863 = vpop.f32.mrf.mxu0
      %v864 = vpop.f32.mrf.mxu0
      %v865 = vadd.f32 0.0, %v864
      %v866 = vpop.f32.mrf.mxu0
      %867 = vmatprep.mubr.bf16.mxu0 %v576
      %868 = vmatmul.mubr.bf16.gmra.mxu0 %v575
      %v869 = vpop.f32.mrf.mxu0
      %v870 = vadd.f32 0.0, %v869
      %v871 = vpop.f32.mrf.mxu0
      %v872 = vpop.f32.mrf.mxu0
      %v873 = vadd.f32 0.0, %v872
      %v874 = vpop.f32.mrf.mxu0
      %875 = vmatprep.mubr.bf16.mxu0 %v578
      %876 = vmatmul.mubr.bf16.gmra.mxu0 %v577
      %v877 = vpop.f32.mrf.mxu0
      %v878 = vadd.f32 0.0, %v877
      %v879 = vpop.f32.mrf.mxu0
      %v880 = vpop.f32.mrf.mxu0
      %v881 = vadd.f32 0.0, %v880
      %v882 = vpop.f32.mrf.mxu0
      %883 = vmatprep.mubr.bf16.mxu0 %v580
      %884 = vmatmul.mubr.bf16.gmra.mxu0 %v579
      %v885 = vpop.f32.mrf.mxu0
      %v886 = vadd.f32 0.0, %v885
      %v887 = vpop.f32.mrf.mxu0
      %v888 = vpop.f32.mrf.mxu0
      %v889 = vadd.f32 0.0, %v888
      %v890 = vpop.f32.mrf.mxu0
      %891 = vmatprep.mubr.bf16.mxu0 %v582
      %892 = vmatmul.mubr.bf16.gmra.mxu0 %v581
      %v893 = vpop.f32.mrf.mxu0
      %v894 = vadd.f32 0.0, %v893
      %v895 = vpop.f32.mrf.mxu0
      %v896 = vpop.f32.mrf.mxu0
      %v897 = vadd.f32 0.0, %v896
      %v898 = vpop.f32.mrf.mxu0
      %899 = vmatprep.mubr.bf16.mxu0 %v584
      %900 = vmatmul.mubr.bf16.gmra.mxu0 %v583
      %v901 = vpop.f32.mrf.mxu0
      %v902 = vadd.f32 0.0, %v901
      %v903 = vpop.f32.mrf.mxu0
      %v904 = vpop.f32.mrf.mxu0
      %v905 = vadd.f32 0.0, %v904
      %v906 = vpop.f32.mrf.mxu0
      %907 = vmatprep.mubr.bf16.mxu0 %v586
      %908 = vmatmul.mubr.bf16.gmra.mxu0 %v585
      %v909 = vpop.f32.mrf.mxu0
      %v910 = vadd.f32 0.0, %v909
      %v911 = vpop.f32.mrf.mxu0
      %v912 = vpop.f32.mrf.mxu0
      %v913 = vadd.f32 0.0, %v912
      %v914 = vpop.f32.mrf.mxu0
      %915 = vmatprep.mubr.bf16.mxu0 %v588
      %916 = vmatmul.mubr.bf16.gmra.mxu0 %v587
      %v917 = vpop.f32.mrf.mxu0
      %v918 = vadd.f32 0.0, %v917
      %v919 = vpop.f32.mrf.mxu0
      %v920 = vpop.f32.mrf.mxu0
      %v921 = vadd.f32 0.0, %v920
      %v922 = vpop.f32.mrf.mxu0
      %923 = vmatprep.mubr.bf16.mxu0 %v590
      %924 = vmatmul.mubr.bf16.gmra.mxu0 %v589
      %v925 = vpop.f32.mrf.mxu0
      %v926 = vadd.f32 0.0, %v925
      %v927 = vpop.f32.mrf.mxu0
      %v928 = vpop.f32.mrf.mxu0
      %v929 = vadd.f32 0.0, %v928
      %v930 = vpop.f32.mrf.mxu0
      %931 = vmatprep.mubr.bf16.mxu0 %v592
      %932 = vmatmul.mubr.bf16.gmra.mxu0 %v591
      %v933 = vpop.f32.mrf.mxu0
      %v934 = vadd.f32 0.0, %v933
      %v935 = vpop.f32.mrf.mxu0
      %v936 = vpop.f32.mrf.mxu0
      %v937 = vadd.f32 0.0, %v936
      %v938 = vpop.f32.mrf.mxu0
      %939 = vmatprep.mubr.bf16.mxu0 %v594
      %940 = vmatmul.mubr.bf16.gmra.mxu0 %v593
      %v941 = vpop.f32.mrf.mxu0
      %v942 = vadd.f32 0.0, %v941
      %v943 = vpop.f32.mrf.mxu0
      %v944 = vpop.f32.mrf.mxu0
      %v945 = vadd.f32 0.0, %v944
      %v946 = vpop.f32.mrf.mxu0
      %947 = vmatprep.mubr.bf16.mxu0 %v596
      %948 = vmatmul.mubr.bf16.gmra.mxu0 %v595
      %v949 = vpop.f32.mrf.mxu0
      %v950 = vadd.f32 0.0, %v949
      %v951 = vpop.f32.mrf.mxu0
      %v952 = vpop.f32.mrf.mxu0
      %v953 = vadd.f32 0.0, %v952
      %v954 = vpop.f32.mrf.mxu0
      %955 = vmatprep.mubr.bf16.mxu0 %v598
      %956 = vmatmul.mubr.bf16.gmra.mxu0 %v597
      %v957 = vpop.f32.mrf.mxu0
      %v958 = vadd.f32 0.0, %v957
      %v959 = vpop.f32.mrf.mxu0
      %v960 = vpop.f32.mrf.mxu0
      %v961 = vadd.f32 0.0, %v960
      %v962 = vpop.f32.mrf.mxu0
      %963 = vmatprep.mubr.bf16.mxu0 %v600
      %964 = vmatmul.mubr.bf16.gmra.mxu0 %v599
      %v965 = vpop.f32.mrf.mxu0
      %v966 = vadd.f32 0.0, %v965
      %v967 = vpop.f32.mrf.mxu0
      %v968 = vpop.f32.mrf.mxu0
      %v969 = vadd.f32 0.0, %v968
      %v970 = vpop.f32.mrf.mxu0
      %971 = vmatprep.mubr.bf16.mxu0 %v602
      %972 = vmatmul.mubr.bf16.gmra.mxu0 %v601
      %v973 = vpop.f32.mrf.mxu0
      %v974 = vadd.f32 0.0, %v973
      %v975 = vpop.f32.mrf.mxu0
      %v976 = vpop.f32.mrf.mxu0
      %v977 = vadd.f32 0.0, %v976
      %v978 = vpop.f32.mrf.mxu0
      %979 = vmatprep.mubr.bf16.mxu0 %v604
      %980 = vmatmul.mubr.bf16.gmra.mxu0 %v603
      %v981 = vpop.f32.mrf.mxu0
      %v982 = vadd.f32 0.0, %v981
      %v983 = vpop.f32.mrf.mxu0
      %v984 = vpop.f32.mrf.mxu0
      %v985 = vadd.f32 0.0, %v984
      %v986 = vpop.f32.mrf.mxu0
      %987 = vmatprep.mubr.bf16.mxu0 %v606
      %988 = vmatmul.mubr.bf16.gmra.mxu0 %v605
      %v989 = vpop.f32.mrf.mxu0
      %v990 = vadd.f32 0.0, %v989
      %v991 = vpop.f32.mrf.mxu0
      %v992 = vpop.f32.mrf.mxu0
      %v993 = vadd.f32 0.0, %v992
      %v994 = vpop.f32.mrf.mxu0
      %995 = vmatprep.mubr.bf16.mxu0 %v608
      %996 = vmatmul.mubr.bf16.gmra.mxu0 %v607
      %v997 = vpop.f32.mrf.mxu0
      %v998 = vadd.f32 0.0, %v997
      %v999 = vpop.f32.mrf.mxu0
      %v1000 = vpop.f32.mrf.mxu0
      %v1001 = vadd.f32 0.0, %v1000
      %v1002 = vpop.f32.mrf.mxu0
      %1003 = vmatprep.mubr.bf16.mxu0 %v610
      %1004 = vmatmul.mubr.bf16.gmra.mxu0 %v609
      %v1005 = vpop.f32.mrf.mxu0
      %v1006 = vadd.f32 0.0, %v1005
      %v1007 = vpop.f32.mrf.mxu0
      %v1008 = vpop.f32.mrf.mxu0
      %v1009 = vadd.f32 0.0, %v1008
      %v1010 = vpop.f32.mrf.mxu0
      %1011 = vmatprep.mubr.bf16.mxu0 %v612
      %1012 = vmatmul.mubr.bf16.gmra.mxu0 %v611
      %v1013 = vpop.f32.mrf.mxu0
      %v1014 = vadd.f32 0.0, %v1013
      %v1015 = vpop.f32.mrf.mxu0
      %v1016 = vpop.f32.mrf.mxu0
      %v1017 = vadd.f32 0.0, %v1016
      %v1018 = vpop.f32.mrf.mxu0
      %1019 = vmatprep.mubr.bf16.mxu0 %v614
      %1020 = vmatmul.mubr.bf16.gmra.mxu0 %v613
      %v1021 = vpop.f32.mrf.mxu0
      %v1022 = vadd.f32 0.0, %v1021
      %v1023 = vpop.f32.mrf.mxu0
      %v1024 = vpop.f32.mrf.mxu0
      %v1025 = vadd.f32 0.0, %v1024
      %v1026 = vpop.f32.mrf.mxu0
      %1027 = vmatprep.mubr.bf16.mxu0 %v616
      %1028 = vmatmul.mubr.bf16.gmra.mxu0 %v615
      %v1029 = vpop.f32.mrf.mxu0
      %v1030 = vadd.f32 0.0, %v1029
      %v1031 = vpop.f32.mrf.mxu0
      %v1032 = vpop.f32.mrf.mxu0
      %v1033 = vadd.f32 0.0, %v1032
      %v1034 = vpop.f32.mrf.mxu0
      %1035 = vmatprep.mubr.bf16.mxu0 %v618
      %1036 = vmatmul.mubr.bf16.gmra.mxu0 %v617
      %v1037 = vpop.f32.mrf.mxu0
      %v1038 = vadd.f32 0.0, %v1037
      %v1039 = vpop.f32.mrf.mxu0
      %v1040 = vpop.f32.mrf.mxu0
      %v1041 = vadd.f32 0.0, %v1040
      %v1042 = vpop.f32.mrf.mxu0
      %1043 = vmatprep.mubr.bf16.mxu0 %v620
      %1044 = vmatmul.mubr.bf16.gmra.mxu0 %v619
      %v1045 = vpop.f32.mrf.mxu0
      %v1046 = vadd.f32 0.0, %v1045
      %v1047 = vpop.f32.mrf.mxu0
      %v1048 = vpop.f32.mrf.mxu0
      %v1049 = vadd.f32 0.0, %v1048
      %v1050 = vpop.f32.mrf.mxu0
      %1051 = vmatprep.mubr.bf16.mxu0 %v622
      %1052 = vmatmul.mubr.bf16.gmra.mxu0 %v621
      %v1053 = vpop.f32.mrf.mxu0
      %v1054 = vadd.f32 0.0, %v1053
      %v1055 = vpop.f32.mrf.mxu0
      %v1056 = vpop.f32.mrf.mxu0
      %v1057 = vadd.f32 0.0, %v1056
      %v1058 = vpop.f32.mrf.mxu0
      %1059 = vmatprep.mubr.bf16.mxu0 %v624
      %1060 = vmatmul.mubr.bf16.gmra.mxu0 %v623
      %v1061 = vpop.f32.mrf.mxu0
      %v1062 = vadd.f32 0.0, %v1061
      %v1063 = vpop.f32.mrf.mxu0
      %v1064 = vpop.f32.mrf.mxu0
      %v1065 = vadd.f32 0.0, %v1064
      %v1066 = vpop.f32.mrf.mxu0
      %1067 = vmatprep.mubr.bf16.mxu0 %v626
      %1068 = vmatmul.mubr.bf16.gmra.mxu0 %v625
      %v1069 = vpop.f32.mrf.mxu0
      %v1070 = vadd.f32 0.0, %v1069
      %v1071 = vpop.f32.mrf.mxu0
      %v1072 = vpop.f32.mrf.mxu0
      %v1073 = vadd.f32 0.0, %v1072
      %v1074 = vpop.f32.mrf.mxu0
      %1075 = vdwg.mxu0
      %v1076 = vadd.f32 %v822, %v825
      %v1077 = vadd.f32 %v1076, %v830
      %v1078 = vadd.f32 %v1077, %v833
      %v1079 = vadd.f32 %v1078, %v838
      %v1080 = vadd.f32 %v1079, %v841
      %v1081 = vadd.f32 %v1080, %v846
      %v1082 = vadd.f32 %v1081, %v849
      %v1083 = vadd.f32 %v1082, %v854
      %v1084 = vadd.f32 %v1083, %v857
      %v1085 = vadd.f32 %v1084, %v862
      %v1086 = vadd.f32 %v1085, %v865
      %v1087 = vadd.f32 %v1086, %v870
      %v1088 = vadd.f32 %v1087, %v873
      %v1089 = vadd.f32 %v1088, %v878
      %v1090 = vadd.f32 %v1089, %v881
      %v1091 = vadd.f32 %v1090, %v886
      %v1092 = vadd.f32 %v1091, %v889
      %v1093 = vadd.f32 %v1092, %v894
      %v1094 = vadd.f32 %v1093, %v897
      %v1095 = vadd.f32 %v1094, %v902
      %v1096 = vadd.f32 %v1095, %v905
      %v1097 = vadd.f32 %v1096, %v910
      %v1098 = vadd.f32 %v1097, %v913
      %v1099 = vadd.f32 %v1098, %v918
      %v1100 = vadd.f32 %v1099, %v921
      %v1101 = vadd.f32 %v1100, %v926
      %v1102 = vadd.f32 %v1101, %v929
      %v1103 = vadd.f32 %v1102, %v934
      %v1104 = vadd.f32 %v1103, %v937
      %v1105 = vadd.f32 %v1104, %v942
      %v1106 = vadd.f32 %v1105, %v945
      %v1107 = vadd.f32 %v1106, %v950
      %v1108 = vadd.f32 %v1107, %v953
      %v1109 = vadd.f32 %v1108, %v958
      %v1110 = vadd.f32 %v1109, %v961
      %v1111 = vadd.f32 %v1110, %v966
      %v1112 = vadd.f32 %v1111, %v969
      %v1113 = vadd.f32 %v1112, %v974
      %v1114 = vadd.f32 %v1113, %v977
      %v1115 = vadd.f32 %v1114, %v982
      %v1116 = vadd.f32 %v1115, %v985
      %v1117 = vadd.f32 %v1116, %v990
      %v1118 = vadd.f32 %v1117, %v993
      %v1119 = vadd.f32 %v1118, %v998
      %v1120 = vadd.f32 %v1119, %v1001
      %v1121 = vadd.f32 %v1120, %v1006
      %v1122 = vadd.f32 %v1121, %v1009
      %v1123 = vadd.f32 %v1122, %v1014
      %v1124 = vadd.f32 %v1123, %v1017
      %v1125 = vadd.f32 %v1124, %v1022
      %v1126 = vadd.f32 %v1125, %v1025
      %v1127 = vadd.f32 %v1126, %v1030
      %v1128 = vadd.f32 %v1127, %v1033
      %v1129 = vadd.f32 %v1128, %v1038
      %v1130 = vadd.f32 %v1129, %v1041
      %v1131 = vadd.f32 %v1130, %v1046
      %v1132 = vadd.f32 %v1131, %v1049
      %v1133 = vadd.f32 %v1132, %v1054
      %v1134 = vadd.f32 %v1133, %v1057
      %v1135 = vadd.f32 %v1134, %v1062
      %v1136 = vadd.f32 %v1135, %v1065
      %v1137 = vadd.f32 %v1136, %v1070
      %v1138 = vadd.f32 %v1137, %v1073
      %v1139 = vrot.slane %v1138, 4
      %v1140 = vadd.f32 %v1138, %v1139
      %v1141 = vrot.slane %v1140, 2
      %v1142 = vadd.f32 %v1140, %v1141
      %v1143 = vrot.slane %v1142, 1
      %v1144 = vadd.f32 %v1142, %v1143
      %1145 = vst [vmem:[%s267] sm:$0x1] %v1144
      %v1146 = vmul.f32 %v822, %v822
      %v1147 = vmul.f32 %v825, %v825
      %v1148 = vmul.f32 %v830, %v830
      %v1149 = vmul.f32 %v833, %v833
      %v1150 = vmul.f32 %v838, %v838
      %v1151 = vmul.f32 %v841, %v841
      %v1152 = vmul.f32 %v846, %v846
      %v1153 = vmul.f32 %v849, %v849
      %v1154 = vmul.f32 %v854, %v854
      %v1155 = vmul.f32 %v857, %v857
      %v1156 = vmul.f32 %v862, %v862
      %v1157 = vmul.f32 %v865, %v865
      %v1158 = vmul.f32 %v870, %v870
      %v1159 = vmul.f32 %v873, %v873
      %v1160 = vmul.f32 %v878, %v878
      %v1161 = vmul.f32 %v881, %v881
      %v1162 = vmul.f32 %v886, %v886
      %v1163 = vmul.f32 %v889, %v889
      %v1164 = vmul.f32 %v894, %v894
      %v1165 = vmul.f32 %v897, %v897
      %v1166 = vmul.f32 %v902, %v902
      %v1167 = vmul.f32 %v905, %v905
      %v1168 = vmul.f32 %v910, %v910
      %v1169 = vmul.f32 %v913, %v913
      %v1170 = vmul.f32 %v918, %v918
      %v1171 = vmul.f32 %v921, %v921
      %v1172 = vmul.f32 %v926, %v926
      %v1173 = vmul.f32 %v929, %v929
      %v1174 = vmul.f32 %v934, %v934
      %v1175 = vmul.f32 %v937, %v937
      %v1176 = vmul.f32 %v942, %v942
      %v1177 = vmul.f32 %v945, %v945
      %v1178 = vmul.f32 %v950, %v950
      %v1179 = vmul.f32 %v953, %v953
      %v1180 = vmul.f32 %v958, %v958
      %v1181 = vmul.f32 %v961, %v961
      %v1182 = vmul.f32 %v966, %v966
      %v1183 = vmul.f32 %v969, %v969
      %v1184 = vmul.f32 %v974, %v974
      %v1185 = vmul.f32 %v977, %v977
      %v1186 = vmul.f32 %v982, %v982
      %v1187 = vmul.f32 %v985, %v985
      %v1188 = vmul.f32 %v990, %v990
      %v1189 = vmul.f32 %v993, %v993
      %v1190 = vmul.f32 %v998, %v998
      %v1191 = vmul.f32 %v1001, %v1001
      %v1192 = vmul.f32 %v1006, %v1006
      %v1193 = vmul.f32 %v1009, %v1009
      %v1194 = vmul.f32 %v1014, %v1014
      %v1195 = vmul.f32 %v1017, %v1017
      %v1196 = vmul.f32 %v1022, %v1022
      %v1197 = vmul.f32 %v1025, %v1025
      %v1198 = vmul.f32 %v1030, %v1030
      %v1199 = vmul.f32 %v1033, %v1033
      %v1200 = vmul.f32 %v1038, %v1038
      %v1201 = vmul.f32 %v1041, %v1041
      %v1202 = vmul.f32 %v1046, %v1046
      %v1203 = vmul.f32 %v1049, %v1049
      %v1204 = vmul.f32 %v1054, %v1054
      %v1205 = vmul.f32 %v1057, %v1057
      %v1206 = vmul.f32 %v1062, %v1062
      %v1207 = vmul.f32 %v1065, %v1065
      %v1208 = vmul.f32 %v1070, %v1070
      %v1209 = vmul.f32 %v1073, %v1073
      %v1210 = vadd.f32 %v1146, %v1147
      %v1211 = vadd.f32 %v1210, %v1148
      %v1212 = vadd.f32 %v1211, %v1149
      %v1213 = vadd.f32 %v1212, %v1150
      %v1214 = vadd.f32 %v1213, %v1151
      %v1215 = vadd.f32 %v1214, %v1152
      %v1216 = vadd.f32 %v1215, %v1153
      %v1217 = vadd.f32 %v1216, %v1154
      %v1218 = vadd.f32 %v1217, %v1155
      %v1219 = vadd.f32 %v1218, %v1156
      %v1220 = vadd.f32 %v1219, %v1157
      %v1221 = vadd.f32 %v1220, %v1158
      %v1222 = vadd.f32 %v1221, %v1159
      %v1223 = vadd.f32 %v1222, %v1160
      %v1224 = vadd.f32 %v1223, %v1161
      %v1225 = vadd.f32 %v1224, %v1162
      %v1226 = vadd.f32 %v1225, %v1163
      %v1227 = vadd.f32 %v1226, %v1164
      %v1228 = vadd.f32 %v1227, %v1165
      %v1229 = vadd.f32 %v1228, %v1166
      %v1230 = vadd.f32 %v1229, %v1167
      %v1231 = vadd.f32 %v1230, %v1168
      %v1232 = vadd.f32 %v1231, %v1169
      %v1233 = vadd.f32 %v1232, %v1170
      %v1234 = vadd.f32 %v1233, %v1171
      %v1235 = vadd.f32 %v1234, %v1172
      %v1236 = vadd.f32 %v1235, %v1173
      %v1237 = vadd.f32 %v1236, %v1174
      %v1238 = vadd.f32 %v1237, %v1175
      %v1239 = vadd.f32 %v1238, %v1176
      %v1240 = vadd.f32 %v1239, %v1177
      %v1241 = vadd.f32 %v1240, %v1178
      %v1242 = vadd.f32 %v1241, %v1179
      %v1243 = vadd.f32 %v1242, %v1180
      %v1244 = vadd.f32 %v1243, %v1181
      %v1245 = vadd.f32 %v1244, %v1182
      %v1246 = vadd.f32 %v1245, %v1183
      %v1247 = vadd.f32 %v1246, %v1184
      %v1248 = vadd.f32 %v1247, %v1185
      %v1249 = vadd.f32 %v1248, %v1186
      %v1250 = vadd.f32 %v1249, %v1187
      %v1251 = vadd.f32 %v1250, %v1188
      %v1252 = vadd.f32 %v1251, %v1189
      %v1253 = vadd.f32 %v1252, %v1190
      %v1254 = vadd.f32 %v1253, %v1191
      %v1255 = vadd.f32 %v1254, %v1192
      %v1256 = vadd.f32 %v1255, %v1193
      %v1257 = vadd.f32 %v1256, %v1194
      %v1258 = vadd.f32 %v1257, %v1195
      %v1259 = vadd.f32 %v1258, %v1196
      %v1260 = vadd.f32 %v1259, %v1197
      %v1261 = vadd.f32 %v1260, %v1198
      %v1262 = vadd.f32 %v1261, %v1199
      %v1263 = vadd.f32 %v1262, %v1200
      %v1264 = vadd.f32 %v1263, %v1201
      %v1265 = vadd.f32 %v1264, %v1202
      %v1266 = vadd.f32 %v1265, %v1203
      %v1267 = vadd.f32 %v1266, %v1204
      %v1268 = vadd.f32 %v1267, %v1205
      %v1269 = vadd.f32 %v1268, %v1206
      %v1270 = vadd.f32 %v1269, %v1207
      %v1271 = vadd.f32 %v1270, %v1208
      %v1272 = vadd.f32 %v1271, %v1209
      %v1273 = vrot.slane %v1272, 4
      %v1274 = vadd.f32 %v1272, %v1273
      %v1275 = vrot.slane %v1274, 2
      %v1276 = vadd.f32 %v1274, %v1275
      %v1277 = vrot.slane %v1276, 1
      %v1278 = vadd.f32 %v1276, %v1277
      %1279 = vst [vmem:[%s273] sm:$0x1] %v1278
      %v1280 = vpack.c.bf16 %v825, %v822
      %v1281 = vpack.c.bf16 %v833, %v830
      %v1282 = vpack.c.bf16 %v841, %v838
      %v1283 = vpack.c.bf16 %v849, %v846
      %v1284 = vpack.c.bf16 %v857, %v854
      %v1285 = vpack.c.bf16 %v865, %v862
      %v1286 = vpack.c.bf16 %v873, %v870
      %v1287 = vpack.c.bf16 %v881, %v878
      %v1288 = vpack.c.bf16 %v889, %v886
      %v1289 = vpack.c.bf16 %v897, %v894
      %v1290 = vpack.c.bf16 %v905, %v902
      %v1291 = vpack.c.bf16 %v913, %v910
      %v1292 = vpack.c.bf16 %v921, %v918
      %v1293 = vpack.c.bf16 %v929, %v926
      %v1294 = vpack.c.bf16 %v937, %v934
      %v1295 = vpack.c.bf16 %v945, %v942
      %v1296 = vpack.c.bf16 %v953, %v950
      %v1297 = vpack.c.bf16 %v961, %v958
      %v1298 = vpack.c.bf16 %v969, %v966
      %v1299 = vpack.c.bf16 %v977, %v974
      %v1300 = vpack.c.bf16 %v985, %v982
      %v1301 = vpack.c.bf16 %v993, %v990
      %v1302 = vpack.c.bf16 %v1001, %v998
      %v1303 = vpack.c.bf16 %v1009, %v1006
      %v1304 = vpack.c.bf16 %v1017, %v1014
      %v1305 = vpack.c.bf16 %v1025, %v1022
      %v1306 = vpack.c.bf16 %v1033, %v1030
      %v1307 = vpack.c.bf16 %v1041, %v1038
      %v1308 = vpack.c.bf16 %v1049, %v1046
      %v1309 = vpack.c.bf16 %v1057, %v1054
      %v1310 = vpack.c.bf16 %v1065, %v1062
      %v1311 = vpack.c.bf16 %v1073, %v1070
      %v1344 = vunpack.c.l.b16 %v1280
      %v1345 = vunpack.c.h.b16 %v1280
      %v1346 = vunpack.c.l.b16 %v1281
      %v1347 = vunpack.c.h.b16 %v1281
      %v1348 = vunpack.c.l.b16 %v1282
      %v1349 = vunpack.c.h.b16 %v1282
      %v1350 = vunpack.c.l.b16 %v1283
      %v1351 = vunpack.c.h.b16 %v1283
      %v1352 = vunpack.c.l.b16 %v1284
      %v1353 = vunpack.c.h.b16 %v1284
      %v1354 = vunpack.c.l.b16 %v1285
      %v1355 = vunpack.c.h.b16 %v1285
      %v1356 = vunpack.c.l.b16 %v1286
      %v1357 = vunpack.c.h.b16 %v1286
      %v1358 = vunpack.c.l.b16 %v1287
      %v1359 = vunpack.c.h.b16 %v1287
      %v1360 = vunpack.c.l.b16 %v1288
      %v1361 = vunpack.c.h.b16 %v1288
      %v1362 = vunpack.c.l.b16 %v1289
      %v1363 = vunpack.c.h.b16 %v1289
      %v1364 = vunpack.c.l.b16 %v1290
      %v1365 = vunpack.c.h.b16 %v1290
      %v1366 = vunpack.c.l.b16 %v1291
      %v1367 = vunpack.c.h.b16 %v1291
      %v1368 = vunpack.c.l.b16 %v1292
      %v1369 = vunpack.c.h.b16 %v1292
      %v1370 = vunpack.c.l.b16 %v1293
      %v1371 = vunpack.c.h.b16 %v1293
      %v1372 = vunpack.c.l.b16 %v1294
      %v1373 = vunpack.c.h.b16 %v1294
      %v1374 = vunpack.c.l.b16 %v1295
      %v1375 = vunpack.c.h.b16 %v1295
      %v1376 = vunpack.c.l.b16 %v1296
      %v1377 = vunpack.c.h.b16 %v1296
      %v1378 = vunpack.c.l.b16 %v1297
      %v1379 = vunpack.c.h.b16 %v1297
      %v1380 = vunpack.c.l.b16 %v1298
      %v1381 = vunpack.c.h.b16 %v1298
      %v1382 = vunpack.c.l.b16 %v1299
      %v1383 = vunpack.c.h.b16 %v1299
      %v1384 = vunpack.c.l.b16 %v1300
      %v1385 = vunpack.c.h.b16 %v1300
      %v1386 = vunpack.c.l.b16 %v1301
      %v1387 = vunpack.c.h.b16 %v1301
      %v1388 = vunpack.c.l.b16 %v1302
      %v1389 = vunpack.c.h.b16 %v1302
      %v1390 = vunpack.c.l.b16 %v1303
      %v1391 = vunpack.c.h.b16 %v1303
      %v1392 = vunpack.c.l.b16 %v1304
      %v1393 = vunpack.c.h.b16 %v1304
      %v1394 = vunpack.c.l.b16 %v1305
      %v1395 = vunpack.c.h.b16 %v1305
      %v1396 = vunpack.c.l.b16 %v1306
      %v1397 = vunpack.c.h.b16 %v1306
      %v1398 = vunpack.c.l.b16 %v1307
      %v1399 = vunpack.c.h.b16 %v1307
      %v1400 = vunpack.c.l.b16 %v1308
      %v1401 = vunpack.c.h.b16 %v1308
      %v1402 = vunpack.c.l.b16 %v1309
      %v1403 = vunpack.c.h.b16 %v1309
      %v1404 = vunpack.c.l.b16 %v1310
      %v1405 = vunpack.c.h.b16 %v1310
      %v1406 = vunpack.c.l.b16 %v1311
      %v1407 = vunpack.c.h.b16 %v1311
      %v1408 = vpack.c.b16 %v1344, %v1344
      %v1409 = vpack.c.b16 %v1345, %v1345
      %v1410 = vpack.c.b16 %v1346, %v1346
      %v1411 = vpack.c.b16 %v1347, %v1347
      %v1412 = vpack.c.b16 %v1348, %v1348
      %v1413 = vpack.c.b16 %v1349, %v1349
      %v1414 = vpack.c.b16 %v1350, %v1350
      %v1415 = vpack.c.b16 %v1351, %v1351
      %v1416 = vpack.c.b16 %v1352, %v1352
      %v1417 = vpack.c.b16 %v1353, %v1353
      %v1418 = vpack.c.b16 %v1354, %v1354
      %v1419 = vpack.c.b16 %v1355, %v1355
      %v1420 = vpack.c.b16 %v1356, %v1356
      %v1421 = vpack.c.b16 %v1357, %v1357
      %v1422 = vpack.c.b16 %v1358, %v1358
      %v1423 = vpack.c.b16 %v1359, %v1359
      %v1424 = vpack.c.b16 %v1360, %v1360
      %v1425 = vpack.c.b16 %v1361, %v1361
      %v1426 = vpack.c.b16 %v1362, %v1362
      %v1427 = vpack.c.b16 %v1363, %v1363
      %v1428 = vpack.c.b16 %v1364, %v1364
      %v1429 = vpack.c.b16 %v1365, %v1365
      %v1430 = vpack.c.b16 %v1366, %v1366
      %v1431 = vpack.c.b16 %v1367, %v1367
      %v1432 = vpack.c.b16 %v1368, %v1368
      %v1433 = vpack.c.b16 %v1369, %v1369
      %v1434 = vpack.c.b16 %v1370, %v1370
      %v1435 = vpack.c.b16 %v1371, %v1371
      %v1436 = vpack.c.b16 %v1372, %v1372
      %v1437 = vpack.c.b16 %v1373, %v1373
      %v1438 = vpack.c.b16 %v1374, %v1374
      %v1439 = vpack.c.b16 %v1375, %v1375
      %v1440 = vpack.c.b16 %v1376, %v1376
      %v1441 = vpack.c.b16 %v1377, %v1377
      %v1442 = vpack.c.b16 %v1378, %v1378
      %v1443 = vpack.c.b16 %v1379, %v1379
      %v1444 = vpack.c.b16 %v1380, %v1380
      %v1445 = vpack.c.b16 %v1381, %v1381
      %v1446 = vpack.c.b16 %v1382, %v1382
      %v1447 = vpack.c.b16 %v1383, %v1383
      %v1448 = vpack.c.b16 %v1384, %v1384
      %v1449 = vpack.c.b16 %v1385, %v1385
      %v1450 = vpack.c.b16 %v1386, %v1386
      %v1451 = vpack.c.b16 %v1387, %v1387
      %v1452 = vpack.c.b16 %v1388, %v1388
      %v1453 = vpack.c.b16 %v1389, %v1389
      %v1454 = vpack.c.b16 %v1390, %v1390
      %v1455 = vpack.c.b16 %v1391, %v1391
      %v1456 = vpack.c.b16 %v1392, %v1392
      %v1457 = vpack.c.b16 %v1393, %v1393
      %v1458 = vpack.c.b16 %v1394, %v1394
      %v1459 = vpack.c.b16 %v1395, %v1395
      %v1460 = vpack.c.b16 %v1396, %v1396
      %v1461 = vpack.c.b16 %v1397, %v1397
      %v1462 = vpack.c.b16 %v1398, %v1398
      %v1463 = vpack.c.b16 %v1399, %v1399
      %v1464 = vpack.c.b16 %v1400, %v1400
      %v1465 = vpack.c.b16 %v1401, %v1401
      %v1466 = vpack.c.b16 %v1402, %v1402
      %v1467 = vpack.c.b16 %v1403, %v1403
      %v1468 = vpack.c.b16 %v1404, %v1404
      %v1469 = vpack.c.b16 %v1405, %v1405
      %v1470 = vpack.c.b16 %v1406, %v1406
      %v1471 = vpack.c.b16 %v1407, %v1407
      %1536 = vst [vmem:[%s260] sm:$0xf] %v1408
      %1537 = vst [vmem:[%s260 + $0x4] sm:$0xf] %v1409
      %1538 = vst [vmem:[%s260 + $0x8] sm:$0xf] %v1410
      %1539 = vst [vmem:[%s260 + $0xc] sm:$0xf] %v1411
      %1540 = vst [vmem:[%s260 + $0x10] sm:$0xf] %v1412
      %1541 = vst [vmem:[%s260 + $0x14] sm:$0xf] %v1413
      %1542 = vst [vmem:[%s260 + $0x18] sm:$0xf] %v1414
      %1543 = vst [vmem:[%s260 + $0x1c] sm:$0xf] %v1415
      %1544 = vst [vmem:[%s260 + $0x20] sm:$0xf] %v1416
      %1545 = vst [vmem:[%s260 + $0x24] sm:$0xf] %v1417
      %1546 = vst [vmem:[%s260 + $0x28] sm:$0xf] %v1418
      %1547 = vst [vmem:[%s260 + $0x2c] sm:$0xf] %v1419
      %1548 = vst [vmem:[%s260 + $0x30] sm:$0xf] %v1420
      %1549 = vst [vmem:[%s260 + $0x34] sm:$0xf] %v1421
      %1550 = vst [vmem:[%s260 + $0x38] sm:$0xf] %v1422
      %1551 = vst [vmem:[%s260 + $0x3c] sm:$0xf] %v1423
      %1552 = vst [vmem:[%s260 + $0x40] sm:$0xf] %v1424
      %1553 = vst [vmem:[%s260 + $0x44] sm:$0xf] %v1425
      %1554 = vst [vmem:[%s260 + $0x48] sm:$0xf] %v1426
      %1555 = vst [vmem:[%s260 + $0x4c] sm:$0xf] %v1427
      %1556 = vst [vmem:[%s260 + $0x50] sm:$0xf] %v1428
      %1557 = vst [vmem:[%s260 + $0x54] sm:$0xf] %v1429
      %1558 = vst [vmem:[%s260 + $0x58] sm:$0xf] %v1430
      %1559 = vst [vmem:[%s260 + $0x5c] sm:$0xf] %v1431
      %1560 = vst [vmem:[%s260 + $0x60] sm:$0xf] %v1432
      %1561 = vst [vmem:[%s260 + $0x64] sm:$0xf] %v1433
      %1562 = vst [vmem:[%s260 + $0x68] sm:$0xf] %v1434
      %1563 = vst [vmem:[%s260 + $0x6c] sm:$0xf] %v1435
      %1564 = vst [vmem:[%s260 + $0x70] sm:$0xf] %v1436
      %1565 = vst [vmem:[%s260 + $0x74] sm:$0xf] %v1437
      %1566 = vst [vmem:[%s260 + $0x78] sm:$0xf] %v1438
      %1567 = vst [vmem:[%s260 + $0x7c] sm:$0xf] %v1439
      %1568 = vst [vmem:[%s260 + $0x80] sm:$0xf] %v1440
      %1569 = vst [vmem:[%s260 + $0x84] sm:$0xf] %v1441
      %1570 = vst [vmem:[%s260 + $0x88] sm:$0xf] %v1442
      %1571 = vst [vmem:[%s260 + $0x8c] sm:$0xf] %v1443
      %1572 = vst [vmem:[%s260 + $0x90] sm:$0xf] %v1444
      %1573 = vst [vmem:[%s260 + $0x94] sm:$0xf] %v1445
      %1574 = vst [vmem:[%s260 + $0x98] sm:$0xf] %v1446
      %1575 = vst [vmem:[%s260 + $0x9c] sm:$0xf] %v1447
      %1576 = vst [vmem:[%s260 + $0xa0] sm:$0xf] %v1448
      %1577 = vst [vmem:[%s260 + $0xa4] sm:$0xf] %v1449
      %1578 = vst [vmem:[%s260 + $0xa8] sm:$0xf] %v1450
      %1579 = vst [vmem:[%s260 + $0xac] sm:$0xf] %v1451
      %1580 = vst [vmem:[%s260 + $0xb0] sm:$0xf] %v1452
      %1581 = vst [vmem:[%s260 + $0xb4] sm:$0xf] %v1453
      %1582 = vst [vmem:[%s260 + $0xb8] sm:$0xf] %v1454
      %1583 = vst [vmem:[%s260 + $0xbc] sm:$0xf] %v1455
      %1584 = vst [vmem:[%s260 + $0xc0] sm:$0xf] %v1456
      %1585 = vst [vmem:[%s260 + $0xc4] sm:$0xf] %v1457
      %1586 = vst [vmem:[%s260 + $0xc8] sm:$0xf] %v1458
      %1587 = vst [vmem:[%s260 + $0xcc] sm:$0xf] %v1459
      %1588 = vst [vmem:[%s260 + $0xd0] sm:$0xf] %v1460
      %1589 = vst [vmem:[%s260 + $0xd4] sm:$0xf] %v1461
      %1590 = vst [vmem:[%s260 + $0xd8] sm:$0xf] %v1462
      %1591 = vst [vmem:[%s260 + $0xdc] sm:$0xf] %v1463
      %1592 = vst [vmem:[%s260 + $0xe0] sm:$0xf] %v1464
      %1593 = vst [vmem:[%s260 + $0xe4] sm:$0xf] %v1465
      %1594 = vst [vmem:[%s260 + $0xe8] sm:$0xf] %v1466
      %1595 = vst [vmem:[%s260 + $0xec] sm:$0xf] %v1467
      %1596 = vst [vmem:[%s260 + $0xf0] sm:$0xf] %v1468
      %1597 = vst [vmem:[%s260 + $0xf4] sm:$0xf] %v1469
      %1598 = vst [vmem:[%s260 + $0xf8] sm:$0xf] %v1470
      %1599 = vst [vmem:[%s260 + $0xfc] sm:$0xf] %v1471
      %s1600 = smul.u32 64, %s20
      %p1601 = scmp.lt.s32.totalorder %s1600, 1151
      %s1602 = scalar_select %p1601, %s1600, 1151
      %p1603 = scmp.lt.s32.totalorder %s21, 0
      %s1604 = scalar_select %p1603, %s21, 0
      %s1605 = sadd.s32 %s1604, %s1602
      %s1606 = smul.addr %s1605, 4
      %s1607 = scalar_lea.vmem %s2, %s1606
      %p1608 = scmp.lt.s32.totalorder %s20, 17
      %s1609 = scalar_select %p1608, %s20, 17
      %p1610 = scmp.lt.s32.totalorder %s21, 0
      %s1611 = scalar_select %p1610, %s21, 0
      %s1612 = sadd.s32 %s1611, %s1609
      %s1613 = scalar_lea.vmem %s3, %s1612
      %p1614 = scmp.lt.s32.totalorder %s20, 17
      %s1615 = scalar_select %p1614, %s20, 17
      %p1616 = scmp.lt.s32.totalorder %s21, 0
      %s1617 = scalar_select %p1616, %s21, 0
      %s1618 = sadd.s32 %s1617, %s1615
      %s1619 = scalar_lea.vmem %s4, %s1618
      // Predicated region
      $region29: #{conv2d.1} parent=27 // pred_check
        %p1620 = pneg %p100
      $region30: #{conv2d.1} parent=27 // pred_check_branch
        %1622 = sbr.rel (%p1620) target = $region32
      $region31: #{conv2d.1} parent=27 // pred_region
        %s1623 = smul.u32 64, %s20
      $region32: #{conv2d.1} parent=27 // pred_fallthru
        _
      // Predicated region
      $region33: #{conv2d.1} parent=27 // pred_check
        %p1624 = pneg %p128
      $region34: #{conv2d.1} parent=27 // pred_check_branch
        %1626 = sbr.rel (%p1624) target = $region36
      $region35: #{conv2d.1} parent=27 // pred_region
        _
      $region36: #{conv2d.1} parent=27 // pred_fallthru
        _
      // Predicated region
      $region37: #{conv2d.1} parent=27 // pred_check
        %p1627 = pneg %p156
      $region38: #{conv2d.1} parent=27 // pred_check_branch
        %1629 = sbr.rel (%p1627) target = $region40
      $region39: #{conv2d.1} parent=27 // pred_region
        _
      $region40: #{conv2d.1} parent=27 // pred_fallthru
        _
    $region28: #{conv2d.1} parent=5 // pred_fallthru
      _
    %p1630 = scmp.le.s32.totalorder 2, %s11
    // Predicated region
    $region41: #{conv2d.1} parent=5 // pred_check
      %p1631 = pneg %p1630
    $region42: #{conv2d.1} parent=5 // pred_check_branch
      %1633 = sbr.rel (%p1631) target = $region44
    $region43: #{conv2d.1} parent=5 // pred_region
      %s1634 = ssub.s32 %s11, 2
      // Predicated region
      $region45: #{conv2d.1} parent=43 // pred_check
        %p1635 = pneg %p106
      $region46: #{conv2d.1} parent=43 // pred_check_branch
        %1637 = sbr.rel (%p1635) target = $region48
      $region47: #{conv2d.1} parent=43 // pred_region
        %s1638 = smul.u32 64, %s22
        %p1639 = scmp.lt.s32.totalorder %s1638, 1151
        %s1640 = scalar_select %p1639, %s1638, 1151
        %p1641 = scmp.lt.s32.totalorder %s23, 0
        %s1642 = scalar_select %p1641, %s23, 0
        %s1643 = sadd.s32 %s1642, %s1640
        %s1644 = smul.addr %s1643, 4
        %s1645 = scalar_lea.vmem %s2, %s1644
      $region48: #{conv2d.1} parent=43 // pred_fallthru
        _
      // Predicated region
      $region49: #{conv2d.1} parent=43 // pred_check
        %p1646 = pneg %p134
      $region50: #{conv2d.1} parent=43 // pred_check_branch
        %1648 = sbr.rel (%p1646) target = $region52
      $region51: #{conv2d.1} parent=43 // pred_region
        %p1649 = scmp.lt.s32.totalorder %s22, 17
        %s1650 = scalar_select %p1649, %s22, 17
        %p1651 = scmp.lt.s32.totalorder %s23, 0
        %s1652 = scalar_select %p1651, %s23, 0
        %s1653 = sadd.s32 %s1652, %s1650
        %s1654 = scalar_lea.vmem %s3, %s1653
      $region52: #{conv2d.1} parent=43 // pred_fallthru
        _
      // Predicated region
      $region53: #{conv2d.1} parent=43 // pred_check
        %p1655 = pneg %p162
      $region54: #{conv2d.1} parent=43 // pred_check_branch
        %1657 = sbr.rel (%p1655) target = $region56
      $region55: #{conv2d.1} parent=43 // pred_region
        %p1658 = scmp.lt.s32.totalorder %s22, 17
        %s1659 = scalar_select %p1658, %s22, 17
        %p1660 = scmp.lt.s32.totalorder %s23, 0
        %s1661 = scalar_select %p1660, %s23, 0
        %s1662 = sadd.s32 %s1661, %s1659
        %s1663 = scalar_lea.vmem %s4, %s1662
      $region56: #{conv2d.1} parent=43 // pred_fallthru
        _
    $region44: #{conv2d.1} parent=5 // pred_fallthru
      _
  $region6: #{conv2d.1} parent=0 // loop_footer
    %s15 = sadd.s32 1, %s11
  $region7: #{conv2d.1} parent=0 // loop_footer_branch
    %10 = sbr.rel target = $region3
  $region8: #{conv2d.1} parent=0 // loop_exit
    _

</llo_original>
